<compile_context>
chip_gen: v5e
topology: v5e:2x2
jax: 0.10.0
libtpu: 0.0.40
codegen_flags: <defaults>
</compile_context>

<pallas_src>
import functools

import jax
import jax.numpy as jnp
from jax import lax
from jax.experimental import pallas as pl
from jax.experimental.pallas import tpu as pltpu


SMEM_SPEC = pl.BlockSpec(memory_space=pltpu.MemorySpace.SMEM)
VMEM_SPEC = pl.BlockSpec(memory_space=pltpu.MemorySpace.VMEM)


# --------------------------------------------------------------------------
# Fused kernel:  GT-layer H0  ->  encode + BN + linear0 + relu
#                ->  multi-layer LSTM (gate-packed, unrolled)
#                ->  in-loop last-step select  ->  score head + graph mix
# --------------------------------------------------------------------------
def make_fused_kernel(*, num_layers, alpha):
    def kernel(*refs):
        (seq_ref, thr_ref, a0_ref, b0m_ref, x_ref, ib_ref,
         gamma_ref, beta_ref, w0_ref, b0_ref) = refs[:10]
        lstm_refs = refs[10:10 + 3 * num_layers]
        wsc_ref, bsc_ref, out_ref = refs[10 + 3 * num_layers:]

        B, N = out_ref.shape
        TB = x_ref.shape[0]
        T = TB // B
        H = lstm_refs[1].shape[0]            # whh: [H, 4H]

        # ---- GT layer, channel 0: H0 = (sum_e w1_e A_e) @ (sum_e w2_e A_e).
        #      Edge-weighted sums are precomputed in XLA and arrive as bf16
        #      MXU operands; accumulate in f32.
        h0 = jnp.dot(a0_ref[...], b0m_ref[...], preferred_element_type=jnp.float32)
        h0_bf = h0.astype(jnp.bfloat16)

        # ---- encode + BatchNorm(batch stats, single pass) + linear0 + relu ----
        x = x_ref[...]                                        # [T*B, N] f32, time-major
        g = jnp.dot(x.astype(jnp.bfloat16), h0_bf, preferred_element_type=jnp.float32)
        ib = jnp.maximum(ib_ref[...], 0.0)                    # relu(diag(I_B)) as row
        enc = x * ib + jnp.maximum(g - thr_ref[0], 0.0)

        inv_tb = 1.0 / TB
        mean = jnp.sum(enc, axis=0, keepdims=True) * inv_tb
        ex2 = jnp.sum(enc * enc, axis=0, keepdims=True) * inv_tb
        var = jnp.maximum(ex2 - mean * mean, 0.0)             # biased var (train mode)
        scale = lax.rsqrt(var + 1e-5) * gamma_ref[...]
        shift = beta_ref[...] - mean * scale
        bn = enc * scale + shift                              # one pass over enc

        layer_in = jnp.maximum(
            jnp.dot(bn.astype(jnp.bfloat16), w0_ref[...],
                    preferred_element_type=jnp.float32) + b0_ref[...],
            0.0)                                              # [T*B, E_dim] f32

        # ---- LSTM stack: gate-packed 4H weights, hoisted input projection,
        #      fully unrolled (T static), no VMEM scratch round trips ----
        seq_col = seq_ref[...]                                # [B, 1] int32
        actual = jnp.zeros((B, H), jnp.float32)
        for l in range(num_layers):
            wih_ref, whh_ref, bias_ref = lstm_refs[3 * l:3 * l + 3]
            # One big [T*B, Din] x [Din, 4H] matmul outside the recurrence.
            pre = (jnp.dot(layer_in.astype(jnp.bfloat16), wih_ref[...],
                           preferred_element_type=jnp.float32) + bias_ref[...])
            whh = whh_ref[...]                                # [H, 4H], loop-invariant
            h = jnp.zeros((B, H), jnp.float32)
            c = jnp.zeros((B, H), jnp.float32)
            is_last = (l == num_layers - 1)
            outs = []
            for t in range(T):                                # static -> unrolled
                lo = t * B
                # single lane-dense [B, 4H] recurrent matmul per step
                gates = pre[lo:lo + B, :] + jnp.dot(
                    h, whh, preferred_element_type=jnp.float32)
                i_g = jax.nn.sigmoid(gates[:, 0 * H:1 * H])
                f_g = jax.nn.sigmoid(gates[:, 1 * H:2 * H])
                g_g = jnp.tanh(gates[:, 2 * H:3 * H])
                o_g = jax.nn.sigmoid(gates[:, 3 * H:4 * H])
                c = f_g * c + i_g * g_g
                h = o_g * jnp.tanh(c)
                if is_last:
                    # masked select of the last valid step (no gather, no OOB)
                    actual = jnp.where(seq_col == (t + 1), h, actual)
                else:
                    outs.append(h)
            if not is_last:
                layer_in = jnp.concatenate(outs, axis=0)      # [T*B, H] time-major

        # ---- score head + sigmoid + graph-biased mixing ----
        s = jnp.dot(actual, wsc_ref[...], preferred_element_type=jnp.float32) + bsc_ref[...]
        p = jax.nn.sigmoid(s)
        graph = p * ib + jnp.maximum(
            jnp.dot(p.astype(jnp.bfloat16), h0_bf, preferred_element_type=jnp.float32),
            0.0)
        out_ref[...] = (1.0 - alpha) * p + alpha * graph

    return kernel


# --------------------------------------------------------------------------
# Forward wrapper
# --------------------------------------------------------------------------
def gtn_rec_forward(params, A, seq_len, seqs, *, alpha, max_seq_length):
    B, T, N = seqs.shape
    assert T == max_seq_length
    num_layers = len(params["lstm"])

    # A.unsqueeze(0).permute(0,3,1,2) -> edge-major [num_edge, N, N];
    # GTConv softmax over edge types (channel 0 only) and the edge-weighted
    # sums are done in XLA (memory-bound), cast to bf16 for the MXU.
    A_e = jnp.transpose(A, (2, 0, 1)).astype(jnp.float32)
    w1 = jax.nn.softmax(params["conv1_w"][0])
    w2 = jax.nn.softmax(params["conv2_w"][0])
    a0 = jnp.einsum("e,eij->ij", w1, A_e).astype(jnp.bfloat16)
    b0m = jnp.einsum("e,eij->ij", w2, A_e).astype(jnp.bfloat16)

    # Time-major flattening (row = t*B + b); BN statistics are permutation-
    # invariant so this matches the batch-major reshape of the reference.
    x_tm = jnp.transpose(seqs, (1, 0, 2)).reshape(T * B, N).astype(jnp.float32)
    seq_col = seq_len.astype(jnp.int32).reshape(B, 1)

    inputs = [seq_col, params["threshold"], a0, b0m, x_tm,
              params["i_b"][None, :], params["bn_gamma"][None, :],
              params["bn_beta"][None, :],
              params["w0"].astype(jnp.bfloat16), params["b0"][None, :]]
    in_specs = [VMEM_SPEC, SMEM_SPEC] + [VMEM_SPEC] * 8
    for lyr in params["lstm"]:
        inputs += [lyr["wih"].astype(jnp.bfloat16), lyr["whh"], lyr["bias"]]
        in_specs += [VMEM_SPEC, VMEM_SPEC, VMEM_SPEC]
    inputs += [params["wsc"], params["bsc"][None, :]]
    in_specs += [VMEM_SPEC, VMEM_SPEC]

    kernel = make_fused_kernel(num_layers=num_layers, alpha=float(alpha))
    return pl.pallas_call(
        kernel,
        out_shape=jax.ShapeDtypeStruct((B, N), jnp.float32),
        in_specs=in_specs,
        out_specs=VMEM_SPEC,
    )(*inputs)


# --------------------------------------------------------------------------
# Deterministic parameter construction (shapes per GTN_Rec.__init__)
# --------------------------------------------------------------------------
def init_params(key, *, num_edge, num_channels, nb_items, basket_embed_dim,
                rnn_units, rnn_layers):
    keys = jax.random.split(key, 5 + 4 * rnn_layers)
    ki = iter(keys)

    # GTConv weights: [num_channels, num_edge]
    conv1_w = 0.1 * jax.random.normal(next(ki), (num_channels, num_edge), jnp.float32)
    conv2_w = 0.1 * jax.random.normal(next(ki), (num_channels, num_edge), jnp.float32)

    # list_linear[0]: kaiming_uniform weight [basket_embed_dim, nb_items], zero bias
    bound0 = jnp.sqrt(6.0 / nb_items)
    w0_pt = jax.random.uniform(next(ki), (basket_embed_dim, nb_items),
                               jnp.float32, -bound0, bound0)
    w0 = w0_pt.T                                      # [nb_items, basket_embed_dim]
    b0 = jnp.zeros((basket_embed_dim,), jnp.float32)

    # LSTM layers (PyTorch init: U(-1/sqrt(H), 1/sqrt(H))), converted to the
    # gate-PACKED layout used by the kernel: wih [Din, 4H], whh [H, 4H],
    # bias [1, 4H] (gate column order i, f, g, o; b_ih + b_hh combined).
    k = 1.0 / jnp.sqrt(jnp.float32(rnn_units))
    lstm = []
    d_in = basket_embed_dim
    for _ in range(rnn_layers):
        wih_pt = jax.random.uniform(next(ki), (4 * rnn_units, d_in), jnp.float32, -k, k)
        whh_pt = jax.random.uniform(next(ki), (4 * rnn_units, rnn_units), jnp.float32, -k, k)
        b_ih = jax.random.uniform(next(ki), (4 * rnn_units,), jnp.float32, -k, k)
        b_hh = jax.random.uniform(next(ki), (4 * rnn_units,), jnp.float32, -k, k)
        lstm.append({"wih": wih_pt.T,                 # [d_in, 4H]
                     "whh": whh_pt.T,                 # [H, 4H]
                     "bias": (b_ih + b_hh)[None, :]}) # [1, 4H]
        d_in = rnn_units

    # h2item_score: xavier_uniform weight [nb_items, rnn_units]
    bound_x = jnp.sqrt(6.0 / (nb_items + rnn_units))
    wsc_pt = jax.random.uniform(next(ki), (nb_items, rnn_units),
                                jnp.float32, -bound_x, bound_x)
    bsc = jax.random.uniform(next(ki), (nb_items,), jnp.float32, -k, k)

    return {
        "conv1_w": conv1_w,
        "conv2_w": conv2_w,
        "w0": w0,
        "b0": b0,
        "lstm": lstm,
        "wsc": wsc_pt.T,                              # [rnn_units, nb_items]
        "bsc": bsc,
        "i_b": jnp.ones((nb_items,), jnp.float32) / nb_items,
        "threshold": jnp.zeros((1,), jnp.float32),
        "bn_gamma": jnp.ones((nb_items,), jnp.float32),
        "bn_beta": jnp.zeros((nb_items,), jnp.float32),
    }


if __name__ == "__main__":
    # Small config consistent with the module's forward.
    num_edge = 3
    num_channels = 2
    nb_items = 128           # == num_nodes; lane-dense output / h0 / score head
    basket_embed_dim = 32
    rnn_units = 32           # 4H = 128 -> gate-packed matmuls are lane-dense
    rnn_layers = 2
    max_seq_length = 8
    batch = 2
    alpha = 0.5

    key = jax.random.PRNGKey(0)
    k_p, k_a, k_s = jax.random.split(key, 3)

    params = init_params(k_p, num_edge=num_edge, num_channels=num_channels,
                         nb_items=nb_items, basket_embed_dim=basket_embed_dim,
                         rnn_units=rnn_units, rnn_layers=rnn_layers)

    # Inputs: adjacency stack, binary basket sequences, per-sequence lengths.
    A = jax.random.uniform(k_a, (nb_items, nb_items, num_edge), jnp.float32)
    seqs = (jax.random.uniform(k_s, (batch, max_seq_length, nb_items)) < 0.2
            ).astype(jnp.float32)
    seq_len = jnp.array([max_seq_length, max_seq_length - 3], jnp.int32)

    fwd = jax.jit(functools.partial(gtn_rec_forward, alpha=alpha,
                                    max_seq_length=max_seq_length))
    predict = fwd(params, A, seq_len, seqs)
    jax.block_until_ready(predict)
    assert predict.shape == (batch, nb_items)
    assert bool(jnp.all(jnp.isfinite(predict)))
    print("KERNEL_OK")
</pallas_src>

<mosaic_0001>
module attributes {stable_mosaic.version = 11 : i64} {
  func.func @kernel(%arg0: memref<2x1xi32, #tpu.memory_space<vmem>>, %arg1: memref<1xf32, #tpu.memory_space<smem>>, %arg2: memref<128x128xbf16, #tpu.memory_space<vmem>>, %arg3: memref<128x128xbf16, #tpu.memory_space<vmem>>, %arg4: memref<16x128xf32, #tpu.memory_space<vmem>>, %arg5: memref<1x128xf32, #tpu.memory_space<vmem>>, %arg6: memref<1x128xf32, #tpu.memory_space<vmem>>, %arg7: memref<1x128xf32, #tpu.memory_space<vmem>>, %arg8: memref<128x32xbf16, #tpu.memory_space<vmem>>, %arg9: memref<1x32xf32, #tpu.memory_space<vmem>>, %arg10: memref<32x128xbf16, #tpu.memory_space<vmem>>, %arg11: memref<32x128xf32, #tpu.memory_space<vmem>>, %arg12: memref<1x128xf32, #tpu.memory_space<vmem>>, %arg13: memref<32x128xbf16, #tpu.memory_space<vmem>>, %arg14: memref<32x128xf32, #tpu.memory_space<vmem>>, %arg15: memref<1x128xf32, #tpu.memory_space<vmem>>, %arg16: memref<32x128xf32, #tpu.memory_space<vmem>>, %arg17: memref<1x128xf32, #tpu.memory_space<vmem>>, %arg18: memref<2x128xf32, #tpu.memory_space<vmem>>) attributes {dimension_semantics = [], scalar_prefetch = 0 : i64, scratch_operands = 0 : i64, tpu.core_type = #tpu.core_type<tc>} {
    %c0 = arith.constant 0 : index
    %c0_0 = arith.constant 0 : index
    %0 = vector.load %arg2[%c0, %c0_0] : memref<128x128xbf16, #tpu.memory_space<vmem>>, vector<128x128xbf16>
    %c0_1 = arith.constant 0 : index
    %c0_2 = arith.constant 0 : index
    %1 = vector.load %arg3[%c0_1, %c0_2] : memref<128x128xbf16, #tpu.memory_space<vmem>>, vector<128x128xbf16>
    %cst = arith.constant dense<0.000000e+00> : vector<128x128xf32>
    %2 = tpu.matmul %0, %1, %cst {dimension_numbers = #tpu.dot_dimension_numbers<[1], [0], [0], [1], [0, 0, 1, 1], [], []>} : vector<128x128xbf16>, vector<128x128xbf16>, vector<128x128xf32> -> vector<128x128xf32>
    %3 = arith.truncf %2 : vector<128x128xf32> to vector<128x128xbf16>
    %c0_3 = arith.constant 0 : index
    %c0_4 = arith.constant 0 : index
    %4 = vector.load %arg4[%c0_3, %c0_4] : memref<16x128xf32, #tpu.memory_space<vmem>>, vector<16x128xf32>
    %5 = arith.truncf %4 : vector<16x128xf32> to vector<16x128xbf16>
    %cst_5 = arith.constant dense<0.000000e+00> : vector<16x128xf32>
    %6 = tpu.matmul %5, %3, %cst_5 {dimension_numbers = #tpu.dot_dimension_numbers<[1], [0], [0], [1], [0, 0, 1, 1], [], []>} : vector<16x128xbf16>, vector<128x128xbf16>, vector<16x128xf32> -> vector<16x128xf32>
    %c0_6 = arith.constant 0 : index
    %c0_7 = arith.constant 0 : index
    %7 = vector.load %arg5[%c0_6, %c0_7] : memref<1x128xf32, #tpu.memory_space<vmem>>, vector<1x128xf32>
    %cst_8 = arith.constant 0.000000e+00 : f32
    %8 = vector.broadcast %cst_8 : f32 to vector<1x128xf32>
    %9 = arith.maximumf %7, %8 : vector<1x128xf32>
    %10 = vector.broadcast %9 : vector<1x128xf32> to vector<16x128xf32>
    %11 = arith.mulf %4, %10 : vector<16x128xf32>
    %c0_9 = arith.constant 0 : index
    %12 = memref.load %arg1[%c0_9] : memref<1xf32, #tpu.memory_space<smem>>
    %13 = vector.broadcast %12 : f32 to vector<16x128xf32>
    %14 = arith.subf %6, %13 : vector<16x128xf32>
    %cst_10 = arith.constant 0.000000e+00 : f32
    %15 = vector.broadcast %cst_10 : f32 to vector<16x128xf32>
    %16 = arith.maximumf %14, %15 : vector<16x128xf32>
    %17 = arith.addf %11, %16 : vector<16x128xf32>
    %cst_11 = arith.constant dense<0.000000e+00> : vector<128xf32>
    %18 = vector.multi_reduction <add>, %17, %cst_11 [0] : vector<16x128xf32> to vector<128xf32>
    %19 = vector.shape_cast %18 : vector<128xf32> to vector<1x128xf32>
    %cst_12 = arith.constant 6.250000e-02 : f32
    %20 = vector.broadcast %cst_12 : f32 to vector<1x128xf32>
    %21 = arith.mulf %19, %20 : vector<1x128xf32>
    %22 = arith.mulf %17, %17 : vector<16x128xf32>
    %cst_13 = arith.constant dense<0.000000e+00> : vector<128xf32>
    %23 = vector.multi_reduction <add>, %22, %cst_13 [0] : vector<16x128xf32> to vector<128xf32>
    %24 = vector.shape_cast %23 : vector<128xf32> to vector<1x128xf32>
    %cst_14 = arith.constant 6.250000e-02 : f32
    %25 = vector.broadcast %cst_14 : f32 to vector<1x128xf32>
    %26 = arith.mulf %24, %25 : vector<1x128xf32>
    %27 = arith.mulf %21, %21 : vector<1x128xf32>
    %28 = arith.subf %26, %27 : vector<1x128xf32>
    %cst_15 = arith.constant 0.000000e+00 : f32
    %29 = vector.broadcast %cst_15 : f32 to vector<1x128xf32>
    %30 = arith.maximumf %28, %29 : vector<1x128xf32>
    %cst_16 = arith.constant 9.99999974E-6 : f32
    %31 = vector.broadcast %cst_16 : f32 to vector<1x128xf32>
    %32 = arith.addf %30, %31 : vector<1x128xf32>
    %33 = math.rsqrt %32 : vector<1x128xf32>
    %c0_17 = arith.constant 0 : index
    %c0_18 = arith.constant 0 : index
    %34 = vector.load %arg6[%c0_17, %c0_18] : memref<1x128xf32, #tpu.memory_space<vmem>>, vector<1x128xf32>
    %35 = arith.mulf %33, %34 : vector<1x128xf32>
    %c0_19 = arith.constant 0 : index
    %c0_20 = arith.constant 0 : index
    %36 = vector.load %arg7[%c0_19, %c0_20] : memref<1x128xf32, #tpu.memory_space<vmem>>, vector<1x128xf32>
    %37 = arith.mulf %21, %35 : vector<1x128xf32>
    %38 = arith.subf %36, %37 : vector<1x128xf32>
    %39 = vector.broadcast %35 : vector<1x128xf32> to vector<16x128xf32>
    %40 = arith.mulf %17, %39 : vector<16x128xf32>
    %41 = vector.broadcast %38 : vector<1x128xf32> to vector<16x128xf32>
    %42 = arith.addf %40, %41 : vector<16x128xf32>
    %43 = arith.truncf %42 : vector<16x128xf32> to vector<16x128xbf16>
    %c0_21 = arith.constant 0 : index
    %c0_22 = arith.constant 0 : index
    %44 = vector.load %arg8[%c0_21, %c0_22] : memref<128x32xbf16, #tpu.memory_space<vmem>>, vector<128x32xbf16>
    %cst_23 = arith.constant dense<0.000000e+00> : vector<16x32xf32>
    %45 = tpu.matmul %43, %44, %cst_23 {dimension_numbers = #tpu.dot_dimension_numbers<[1], [0], [0], [1], [0, 0, 1, 1], [], []>} : vector<16x128xbf16>, vector<128x32xbf16>, vector<16x32xf32> -> vector<16x32xf32>
    %c0_24 = arith.constant 0 : index
    %c0_25 = arith.constant 0 : index
    %46 = vector.load %arg9[%c0_24, %c0_25] : memref<1x32xf32, #tpu.memory_space<vmem>>, vector<1x32xf32>
    %47 = vector.broadcast %46 : vector<1x32xf32> to vector<16x32xf32>
    %48 = arith.addf %45, %47 : vector<16x32xf32>
    %cst_26 = arith.constant 0.000000e+00 : f32
    %49 = vector.broadcast %cst_26 : f32 to vector<16x32xf32>
    %50 = arith.maximumf %48, %49 : vector<16x32xf32>
    %c0_27 = arith.constant 0 : index
    %c0_28 = arith.constant 0 : index
    %51 = vector.load %arg0[%c0_27, %c0_28] : memref<2x1xi32, #tpu.memory_space<vmem>>, vector<2x1xi32>
    %cst_29 = arith.constant 0.000000e+00 : f32
    %52 = vector.broadcast %cst_29 : f32 to vector<2x32xf32>
    %53 = arith.truncf %50 : vector<16x32xf32> to vector<16x32xbf16>
    %c0_30 = arith.constant 0 : index
    %c0_31 = arith.constant 0 : index
    %54 = vector.load %arg10[%c0_30, %c0_31] : memref<32x128xbf16, #tpu.memory_space<vmem>>, vector<32x128xbf16>
    %cst_32 = arith.constant dense<0.000000e+00> : vector<16x128xf32>
    %55 = tpu.matmul %53, %54, %cst_32 {dimension_numbers = #tpu.dot_dimension_numbers<[1], [0], [0], [1], [0, 0, 1, 1], [], []>} : vector<16x32xbf16>, vector<32x128xbf16>, vector<16x128xf32> -> vector<16x128xf32>
    %c0_33 = arith.constant 0 : index
    %c0_34 = arith.constant 0 : index
    %56 = vector.load %arg12[%c0_33, %c0_34] : memref<1x128xf32, #tpu.memory_space<vmem>>, vector<1x128xf32>
    %57 = vector.broadcast %56 : vector<1x128xf32> to vector<16x128xf32>
    %58 = arith.addf %55, %57 : vector<16x128xf32>
    %c0_35 = arith.constant 0 : index
    %c0_36 = arith.constant 0 : index
    %59 = vector.load %arg11[%c0_35, %c0_36] : memref<32x128xf32, #tpu.memory_space<vmem>>, vector<32x128xf32>
    %cst_37 = arith.constant 0.000000e+00 : f32
    %60 = vector.broadcast %cst_37 : f32 to vector<2x32xf32>
    %cst_38 = arith.constant 0.000000e+00 : f32
    %61 = vector.broadcast %cst_38 : f32 to vector<2x32xf32>
    %62 = vector.extract_strided_slice %58 {offsets = [0, 0], sizes = [2, 128], strides = [1, 1]} : vector<16x128xf32> to vector<2x128xf32>
    %cst_39 = arith.constant dense<0.000000e+00> : vector<2x128xf32>
    %63 = tpu.matmul %60, %59, %cst_39 {dimension_numbers = #tpu.dot_dimension_numbers<[1], [0], [0], [1], [0, 0, 1, 1], [], []>} : vector<2x32xf32>, vector<32x128xf32>, vector<2x128xf32> -> vector<2x128xf32>
    %64 = arith.addf %62, %63 : vector<2x128xf32>
    %65 = vector.extract_strided_slice %64 {offsets = [0, 0], sizes = [2, 32], strides = [1, 1]} : vector<2x128xf32> to vector<2x32xf32>
    %66 = arith.negf %65 : vector<2x32xf32>
    %67 = math.exp %66 : vector<2x32xf32>
    %cst_40 = arith.constant 1.000000e+00 : f32
    %68 = vector.broadcast %cst_40 : f32 to vector<2x32xf32>
    %69 = arith.addf %68, %67 : vector<2x32xf32>
    %70 = arith.divf %68, %69 : vector<2x32xf32>
    %71 = vector.extract_strided_slice %64 {offsets = [0, 32], sizes = [2, 32], strides = [1, 1]} : vector<2x128xf32> to vector<2x32xf32>
    %72 = arith.negf %71 : vector<2x32xf32>
    %73 = math.exp %72 : vector<2x32xf32>
    %cst_41 = arith.constant 1.000000e+00 : f32
    %74 = vector.broadcast %cst_41 : f32 to vector<2x32xf32>
    %75 = arith.addf %74, %73 : vector<2x32xf32>
    %76 = arith.divf %74, %75 : vector<2x32xf32>
    %77 = vector.extract_strided_slice %64 {offsets = [0, 64], sizes = [2, 32], strides = [1, 1]} : vector<2x128xf32> to vector<2x32xf32>
    %78 = math.tanh %77 : vector<2x32xf32>
    %79 = vector.extract_strided_slice %64 {offsets = [0, 96], sizes = [2, 32], strides = [1, 1]} : vector<2x128xf32> to vector<2x32xf32>
    %80 = arith.negf %79 : vector<2x32xf32>
    %81 = math.exp %80 : vector<2x32xf32>
    %cst_42 = arith.constant 1.000000e+00 : f32
    %82 = vector.broadcast %cst_42 : f32 to vector<2x32xf32>
    %83 = arith.addf %82, %81 : vector<2x32xf32>
    %84 = arith.divf %82, %83 : vector<2x32xf32>
    %85 = arith.mulf %76, %61 : vector<2x32xf32>
    %86 = arith.mulf %70, %78 : vector<2x32xf32>
    %87 = arith.addf %85, %86 : vector<2x32xf32>
    %88 = math.tanh %87 : vector<2x32xf32>
    %89 = arith.mulf %84, %88 : vector<2x32xf32>
    %90 = vector.extract_strided_slice %58 {offsets = [2, 0], sizes = [2, 128], strides = [1, 1]} : vector<16x128xf32> to vector<2x128xf32>
    %cst_43 = arith.constant dense<0.000000e+00> : vector<2x128xf32>
    %91 = tpu.matmul %89, %59, %cst_43 {dimension_numbers = #tpu.dot_dimension_numbers<[1], [0], [0], [1], [0, 0, 1, 1], [], []>} : vector<2x32xf32>, vector<32x128xf32>, vector<2x128xf32> -> vector<2x128xf32>
    %92 = arith.addf %90, %91 : vector<2x128xf32>
    %93 = vector.extract_strided_slice %92 {offsets = [0, 0], sizes = [2, 32], strides = [1, 1]} : vector<2x128xf32> to vector<2x32xf32>
    %94 = arith.negf %93 : vector<2x32xf32>
    %95 = math.exp %94 : vector<2x32xf32>
    %cst_44 = arith.constant 1.000000e+00 : f32
    %96 = vector.broadcast %cst_44 : f32 to vector<2x32xf32>
    %97 = arith.addf %96, %95 : vector<2x32xf32>
    %98 = arith.divf %96, %97 : vector<2x32xf32>
    %99 = vector.extract_strided_slice %92 {offsets = [0, 32], sizes = [2, 32], strides = [1, 1]} : vector<2x128xf32> to vector<2x32xf32>
    %100 = arith.negf %99 : vector<2x32xf32>
    %101 = math.exp %100 : vector<2x32xf32>
    %cst_45 = arith.constant 1.000000e+00 : f32
    %102 = vector.broadcast %cst_45 : f32 to vector<2x32xf32>
    %103 = arith.addf %102, %101 : vector<2x32xf32>
    %104 = arith.divf %102, %103 : vector<2x32xf32>
    %105 = vector.extract_strided_slice %92 {offsets = [0, 64], sizes = [2, 32], strides = [1, 1]} : vector<2x128xf32> to vector<2x32xf32>
    %106 = math.tanh %105 : vector<2x32xf32>
    %107 = vector.extract_strided_slice %92 {offsets = [0, 96], sizes = [2, 32], strides = [1, 1]} : vector<2x128xf32> to vector<2x32xf32>
    %108 = arith.negf %107 : vector<2x32xf32>
    %109 = math.exp %108 : vector<2x32xf32>
    %cst_46 = arith.constant 1.000000e+00 : f32
    %110 = vector.broadcast %cst_46 : f32 to vector<2x32xf32>
    %111 = arith.addf %110, %109 : vector<2x32xf32>
    %112 = arith.divf %110, %111 : vector<2x32xf32>
    %113 = arith.mulf %104, %87 : vector<2x32xf32>
    %114 = arith.mulf %98, %106 : vector<2x32xf32>
    %115 = arith.addf %113, %114 : vector<2x32xf32>
    %116 = math.tanh %115 : vector<2x32xf32>
    %117 = arith.mulf %112, %116 : vector<2x32xf32>
    %118 = vector.extract_strided_slice %58 {offsets = [4, 0], sizes = [2, 128], strides = [1, 1]} : vector<16x128xf32> to vector<2x128xf32>
    %cst_47 = arith.constant dense<0.000000e+00> : vector<2x128xf32>
    %119 = tpu.matmul %117, %59, %cst_47 {dimension_numbers = #tpu.dot_dimension_numbers<[1], [0], [0], [1], [0, 0, 1, 1], [], []>} : vector<2x32xf32>, vector<32x128xf32>, vector<2x128xf32> -> vector<2x128xf32>
    %120 = arith.addf %118, %119 : vector<2x128xf32>
    %121 = vector.extract_strided_slice %120 {offsets = [0, 0], sizes = [2, 32], strides = [1, 1]} : vector<2x128xf32> to vector<2x32xf32>
    %122 = arith.negf %121 : vector<2x32xf32>
    %123 = math.exp %122 : vector<2x32xf32>
    %cst_48 = arith.constant 1.000000e+00 : f32
    %124 = vector.broadcast %cst_48 : f32 to vector<2x32xf32>
    %125 = arith.addf %124, %123 : vector<2x32xf32>
    %126 = arith.divf %124, %125 : vector<2x32xf32>
    %127 = vector.extract_strided_slice %120 {offsets = [0, 32], sizes = [2, 32], strides = [1, 1]} : vector<2x128xf32> to vector<2x32xf32>
    %128 = arith.negf %127 : vector<2x32xf32>
    %129 = math.exp %128 : vector<2x32xf32>
    %cst_49 = arith.constant 1.000000e+00 : f32
    %130 = vector.broadcast %cst_49 : f32 to vector<2x32xf32>
    %131 = arith.addf %130, %129 : vector<2x32xf32>
    %132 = arith.divf %130, %131 : vector<2x32xf32>
    %133 = vector.extract_strided_slice %120 {offsets = [0, 64], sizes = [2, 32], strides = [1, 1]} : vector<2x128xf32> to vector<2x32xf32>
    %134 = math.tanh %133 : vector<2x32xf32>
    %135 = vector.extract_strided_slice %120 {offsets = [0, 96], sizes = [2, 32], strides = [1, 1]} : vector<2x128xf32> to vector<2x32xf32>
    %136 = arith.negf %135 : vector<2x32xf32>
    %137 = math.exp %136 : vector<2x32xf32>
    %cst_50 = arith.constant 1.000000e+00 : f32
    %138 = vector.broadcast %cst_50 : f32 to vector<2x32xf32>
    %139 = arith.addf %138, %137 : vector<2x32xf32>
    %140 = arith.divf %138, %139 : vector<2x32xf32>
    %141 = arith.mulf %132, %115 : vector<2x32xf32>
    %142 = arith.mulf %126, %134 : vector<2x32xf32>
    %143 = arith.addf %141, %142 : vector<2x32xf32>
    %144 = math.tanh %143 : vector<2x32xf32>
    %145 = arith.mulf %140, %144 : vector<2x32xf32>
    %146 = vector.extract_strided_slice %58 {offsets = [6, 0], sizes = [2, 128], strides = [1, 1]} : vector<16x128xf32> to vector<2x128xf32>
    %cst_51 = arith.constant dense<0.000000e+00> : vector<2x128xf32>
    %147 = tpu.matmul %145, %59, %cst_51 {dimension_numbers = #tpu.dot_dimension_numbers<[1], [0], [0], [1], [0, 0, 1, 1], [], []>} : vector<2x32xf32>, vector<32x128xf32>, vector<2x128xf32> -> vector<2x128xf32>
    %148 = arith.addf %146, %147 : vector<2x128xf32>
    %149 = vector.extract_strided_slice %148 {offsets = [0, 0], sizes = [2, 32], strides = [1, 1]} : vector<2x128xf32> to vector<2x32xf32>
    %150 = arith.negf %149 : vector<2x32xf32>
    %151 = math.exp %150 : vector<2x32xf32>
    %cst_52 = arith.constant 1.000000e+00 : f32
    %152 = vector.broadcast %cst_52 : f32 to vector<2x32xf32>
    %153 = arith.addf %152, %151 : vector<2x32xf32>
    %154 = arith.divf %152, %153 : vector<2x32xf32>
    %155 = vector.extract_strided_slice %148 {offsets = [0, 32], sizes = [2, 32], strides = [1, 1]} : vector<2x128xf32> to vector<2x32xf32>
    %156 = arith.negf %155 : vector<2x32xf32>
    %157 = math.exp %156 : vector<2x32xf32>
    %cst_53 = arith.constant 1.000000e+00 : f32
    %158 = vector.broadcast %cst_53 : f32 to vector<2x32xf32>
    %159 = arith.addf %158, %157 : vector<2x32xf32>
    %160 = arith.divf %158, %159 : vector<2x32xf32>
    %161 = vector.extract_strided_slice %148 {offsets = [0, 64], sizes = [2, 32], strides = [1, 1]} : vector<2x128xf32> to vector<2x32xf32>
    %162 = math.tanh %161 : vector<2x32xf32>
    %163 = vector.extract_strided_slice %148 {offsets = [0, 96], sizes = [2, 32], strides = [1, 1]} : vector<2x128xf32> to vector<2x32xf32>
    %164 = arith.negf %163 : vector<2x32xf32>
    %165 = math.exp %164 : vector<2x32xf32>
    %cst_54 = arith.constant 1.000000e+00 : f32
    %166 = vector.broadcast %cst_54 : f32 to vector<2x32xf32>
    %167 = arith.addf %166, %165 : vector<2x32xf32>
    %168 = arith.divf %166, %167 : vector<2x32xf32>
    %169 = arith.mulf %160, %143 : vector<2x32xf32>
    %170 = arith.mulf %154, %162 : vector<2x32xf32>
    %171 = arith.addf %169, %170 : vector<2x32xf32>
    %172 = math.tanh %171 : vector<2x32xf32>
    %173 = arith.mulf %168, %172 : vector<2x32xf32>
    %174 = vector.extract_strided_slice %58 {offsets = [8, 0], sizes = [2, 128], strides = [1, 1]} : vector<16x128xf32> to vector<2x128xf32>
    %cst_55 = arith.constant dense<0.000000e+00> : vector<2x128xf32>
    %175 = tpu.matmul %173, %59, %cst_55 {dimension_numbers = #tpu.dot_dimension_numbers<[1], [0], [0], [1], [0, 0, 1, 1], [], []>} : vector<2x32xf32>, vector<32x128xf32>, vector<2x128xf32> -> vector<2x128xf32>
    %176 = arith.addf %174, %175 : vector<2x128xf32>
    %177 = vector.extract_strided_slice %176 {offsets = [0, 0], sizes = [2, 32], strides = [1, 1]} : vector<2x128xf32> to vector<2x32xf32>
    %178 = arith.negf %177 : vector<2x32xf32>
    %179 = math.exp %178 : vector<2x32xf32>
    %cst_56 = arith.constant 1.000000e+00 : f32
    %180 = vector.broadcast %cst_56 : f32 to vector<2x32xf32>
    %181 = arith.addf %180, %179 : vector<2x32xf32>
    %182 = arith.divf %180, %181 : vector<2x32xf32>
    %183 = vector.extract_strided_slice %176 {offsets = [0, 32], sizes = [2, 32], strides = [1, 1]} : vector<2x128xf32> to vector<2x32xf32>
    %184 = arith.negf %183 : vector<2x32xf32>
    %185 = math.exp %184 : vector<2x32xf32>
    %cst_57 = arith.constant 1.000000e+00 : f32
    %186 = vector.broadcast %cst_57 : f32 to vector<2x32xf32>
    %187 = arith.addf %186, %185 : vector<2x32xf32>
    %188 = arith.divf %186, %187 : vector<2x32xf32>
    %189 = vector.extract_strided_slice %176 {offsets = [0, 64], sizes = [2, 32], strides = [1, 1]} : vector<2x128xf32> to vector<2x32xf32>
    %190 = math.tanh %189 : vector<2x32xf32>
    %191 = vector.extract_strided_slice %176 {offsets = [0, 96], sizes = [2, 32], strides = [1, 1]} : vector<2x128xf32> to vector<2x32xf32>
    %192 = arith.negf %191 : vector<2x32xf32>
    %193 = math.exp %192 : vector<2x32xf32>
    %cst_58 = arith.constant 1.000000e+00 : f32
    %194 = vector.broadcast %cst_58 : f32 to vector<2x32xf32>
    %195 = arith.addf %194, %193 : vector<2x32xf32>
    %196 = arith.divf %194, %195 : vector<2x32xf32>
    %197 = arith.mulf %188, %171 : vector<2x32xf32>
    %198 = arith.mulf %182, %190 : vector<2x32xf32>
    %199 = arith.addf %197, %198 : vector<2x32xf32>
    %200 = math.tanh %199 : vector<2x32xf32>
    %201 = arith.mulf %196, %200 : vector<2x32xf32>
    %202 = vector.extract_strided_slice %58 {offsets = [10, 0], sizes = [2, 128], strides = [1, 1]} : vector<16x128xf32> to vector<2x128xf32>
    %cst_59 = arith.constant dense<0.000000e+00> : vector<2x128xf32>
    %203 = tpu.matmul %201, %59, %cst_59 {dimension_numbers = #tpu.dot_dimension_numbers<[1], [0], [0], [1], [0, 0, 1, 1], [], []>} : vector<2x32xf32>, vector<32x128xf32>, vector<2x128xf32> -> vector<2x128xf32>
    %204 = arith.addf %202, %203 : vector<2x128xf32>
    %205 = vector.extract_strided_slice %204 {offsets = [0, 0], sizes = [2, 32], strides = [1, 1]} : vector<2x128xf32> to vector<2x32xf32>
    %206 = arith.negf %205 : vector<2x32xf32>
    %207 = math.exp %206 : vector<2x32xf32>
    %cst_60 = arith.constant 1.000000e+00 : f32
    %208 = vector.broadcast %cst_60 : f32 to vector<2x32xf32>
    %209 = arith.addf %208, %207 : vector<2x32xf32>
    %210 = arith.divf %208, %209 : vector<2x32xf32>
    %211 = vector.extract_strided_slice %204 {offsets = [0, 32], sizes = [2, 32], strides = [1, 1]} : vector<2x128xf32> to vector<2x32xf32>
    %212 = arith.negf %211 : vector<2x32xf32>
    %213 = math.exp %212 : vector<2x32xf32>
    %cst_61 = arith.constant 1.000000e+00 : f32
    %214 = vector.broadcast %cst_61 : f32 to vector<2x32xf32>
    %215 = arith.addf %214, %213 : vector<2x32xf32>
    %216 = arith.divf %214, %215 : vector<2x32xf32>
    %217 = vector.extract_strided_slice %204 {offsets = [0, 64], sizes = [2, 32], strides = [1, 1]} : vector<2x128xf32> to vector<2x32xf32>
    %218 = math.tanh %217 : vector<2x32xf32>
    %219 = vector.extract_strided_slice %204 {offsets = [0, 96], sizes = [2, 32], strides = [1, 1]} : vector<2x128xf32> to vector<2x32xf32>
    %220 = arith.negf %219 : vector<2x32xf32>
    %221 = math.exp %220 : vector<2x32xf32>
    %cst_62 = arith.constant 1.000000e+00 : f32
    %222 = vector.broadcast %cst_62 : f32 to vector<2x32xf32>
    %223 = arith.addf %222, %221 : vector<2x32xf32>
    %224 = arith.divf %222, %223 : vector<2x32xf32>
    %225 = arith.mulf %216, %199 : vector<2x32xf32>
    %226 = arith.mulf %210, %218 : vector<2x32xf32>
    %227 = arith.addf %225, %226 : vector<2x32xf32>
    %228 = math.tanh %227 : vector<2x32xf32>
    %229 = arith.mulf %224, %228 : vector<2x32xf32>
    %230 = vector.extract_strided_slice %58 {offsets = [12, 0], sizes = [2, 128], strides = [1, 1]} : vector<16x128xf32> to vector<2x128xf32>
    %cst_63 = arith.constant dense<0.000000e+00> : vector<2x128xf32>
    %231 = tpu.matmul %229, %59, %cst_63 {dimension_numbers = #tpu.dot_dimension_numbers<[1], [0], [0], [1], [0, 0, 1, 1], [], []>} : vector<2x32xf32>, vector<32x128xf32>, vector<2x128xf32> -> vector<2x128xf32>
    %232 = arith.addf %230, %231 : vector<2x128xf32>
    %233 = vector.extract_strided_slice %232 {offsets = [0, 0], sizes = [2, 32], strides = [1, 1]} : vector<2x128xf32> to vector<2x32xf32>
    %234 = arith.negf %233 : vector<2x32xf32>
    %235 = math.exp %234 : vector<2x32xf32>
    %cst_64 = arith.constant 1.000000e+00 : f32
    %236 = vector.broadcast %cst_64 : f32 to vector<2x32xf32>
    %237 = arith.addf %236, %235 : vector<2x32xf32>
    %238 = arith.divf %236, %237 : vector<2x32xf32>
    %239 = vector.extract_strided_slice %232 {offsets = [0, 32], sizes = [2, 32], strides = [1, 1]} : vector<2x128xf32> to vector<2x32xf32>
    %240 = arith.negf %239 : vector<2x32xf32>
    %241 = math.exp %240 : vector<2x32xf32>
    %cst_65 = arith.constant 1.000000e+00 : f32
    %242 = vector.broadcast %cst_65 : f32 to vector<2x32xf32>
    %243 = arith.addf %242, %241 : vector<2x32xf32>
    %244 = arith.divf %242, %243 : vector<2x32xf32>
    %245 = vector.extract_strided_slice %232 {offsets = [0, 64], sizes = [2, 32], strides = [1, 1]} : vector<2x128xf32> to vector<2x32xf32>
    %246 = math.tanh %245 : vector<2x32xf32>
    %247 = vector.extract_strided_slice %232 {offsets = [0, 96], sizes = [2, 32], strides = [1, 1]} : vector<2x128xf32> to vector<2x32xf32>
    %248 = arith.negf %247 : vector<2x32xf32>
    %249 = math.exp %248 : vector<2x32xf32>
    %cst_66 = arith.constant 1.000000e+00 : f32
    %250 = vector.broadcast %cst_66 : f32 to vector<2x32xf32>
    %251 = arith.addf %250, %249 : vector<2x32xf32>
    %252 = arith.divf %250, %251 : vector<2x32xf32>
    %253 = arith.mulf %244, %227 : vector<2x32xf32>
    %254 = arith.mulf %238, %246 : vector<2x32xf32>
    %255 = arith.addf %253, %254 : vector<2x32xf32>
    %256 = math.tanh %255 : vector<2x32xf32>
    %257 = arith.mulf %252, %256 : vector<2x32xf32>
    %258 = vector.extract_strided_slice %58 {offsets = [14, 0], sizes = [2, 128], strides = [1, 1]} : vector<16x128xf32> to vector<2x128xf32>
    %cst_67 = arith.constant dense<0.000000e+00> : vector<2x128xf32>
    %259 = tpu.matmul %257, %59, %cst_67 {dimension_numbers = #tpu.dot_dimension_numbers<[1], [0], [0], [1], [0, 0, 1, 1], [], []>} : vector<2x32xf32>, vector<32x128xf32>, vector<2x128xf32> -> vector<2x128xf32>
    %260 = arith.addf %258, %259 : vector<2x128xf32>
    %261 = vector.extract_strided_slice %260 {offsets = [0, 0], sizes = [2, 32], strides = [1, 1]} : vector<2x128xf32> to vector<2x32xf32>
    %262 = arith.negf %261 : vector<2x32xf32>
    %263 = math.exp %262 : vector<2x32xf32>
    %cst_68 = arith.constant 1.000000e+00 : f32
    %264 = vector.broadcast %cst_68 : f32 to vector<2x32xf32>
    %265 = arith.addf %264, %263 : vector<2x32xf32>
    %266 = arith.divf %264, %265 : vector<2x32xf32>
    %267 = vector.extract_strided_slice %260 {offsets = [0, 32], sizes = [2, 32], strides = [1, 1]} : vector<2x128xf32> to vector<2x32xf32>
    %268 = arith.negf %267 : vector<2x32xf32>
    %269 = math.exp %268 : vector<2x32xf32>
    %cst_69 = arith.constant 1.000000e+00 : f32
    %270 = vector.broadcast %cst_69 : f32 to vector<2x32xf32>
    %271 = arith.addf %270, %269 : vector<2x32xf32>
    %272 = arith.divf %270, %271 : vector<2x32xf32>
    %273 = vector.extract_strided_slice %260 {offsets = [0, 64], sizes = [2, 32], strides = [1, 1]} : vector<2x128xf32> to vector<2x32xf32>
    %274 = math.tanh %273 : vector<2x32xf32>
    %275 = vector.extract_strided_slice %260 {offsets = [0, 96], sizes = [2, 32], strides = [1, 1]} : vector<2x128xf32> to vector<2x32xf32>
    %276 = arith.negf %275 : vector<2x32xf32>
    %277 = math.exp %276 : vector<2x32xf32>
    %cst_70 = arith.constant 1.000000e+00 : f32
    %278 = vector.broadcast %cst_70 : f32 to vector<2x32xf32>
    %279 = arith.addf %278, %277 : vector<2x32xf32>
    %280 = arith.divf %278, %279 : vector<2x32xf32>
    %281 = arith.mulf %272, %255 : vector<2x32xf32>
    %282 = arith.mulf %266, %274 : vector<2x32xf32>
    %283 = arith.addf %281, %282 : vector<2x32xf32>
    %284 = math.tanh %283 : vector<2x32xf32>
    %285 = arith.mulf %280, %284 : vector<2x32xf32>
    %286 = tpu.concatenate %89, %117, %145, %173, %201, %229, %257, %285 in 0 : vector<2x32xf32>, vector<2x32xf32>, vector<2x32xf32>, vector<2x32xf32>, vector<2x32xf32>, vector<2x32xf32>, vector<2x32xf32>, vector<2x32xf32> -> vector<16x32xf32>
    %287 = arith.truncf %286 : vector<16x32xf32> to vector<16x32xbf16>
    %c0_71 = arith.constant 0 : index
    %c0_72 = arith.constant 0 : index
    %288 = vector.load %arg13[%c0_71, %c0_72] : memref<32x128xbf16, #tpu.memory_space<vmem>>, vector<32x128xbf16>
    %cst_73 = arith.constant dense<0.000000e+00> : vector<16x128xf32>
    %289 = tpu.matmul %287, %288, %cst_73 {dimension_numbers = #tpu.dot_dimension_numbers<[1], [0], [0], [1], [0, 0, 1, 1], [], []>} : vector<16x32xbf16>, vector<32x128xbf16>, vector<16x128xf32> -> vector<16x128xf32>
    %c0_74 = arith.constant 0 : index
    %c0_75 = arith.constant 0 : index
    %290 = vector.load %arg15[%c0_74, %c0_75] : memref<1x128xf32, #tpu.memory_space<vmem>>, vector<1x128xf32>
    %291 = vector.broadcast %290 : vector<1x128xf32> to vector<16x128xf32>
    %292 = arith.addf %289, %291 : vector<16x128xf32>
    %c0_76 = arith.constant 0 : index
    %c0_77 = arith.constant 0 : index
    %293 = vector.load %arg14[%c0_76, %c0_77] : memref<32x128xf32, #tpu.memory_space<vmem>>, vector<32x128xf32>
    %cst_78 = arith.constant 0.000000e+00 : f32
    %294 = vector.broadcast %cst_78 : f32 to vector<2x32xf32>
    %cst_79 = arith.constant 0.000000e+00 : f32
    %295 = vector.broadcast %cst_79 : f32 to vector<2x32xf32>
    %296 = vector.extract_strided_slice %292 {offsets = [0, 0], sizes = [2, 128], strides = [1, 1]} : vector<16x128xf32> to vector<2x128xf32>
    %cst_80 = arith.constant dense<0.000000e+00> : vector<2x128xf32>
    %297 = tpu.matmul %294, %293, %cst_80 {dimension_numbers = #tpu.dot_dimension_numbers<[1], [0], [0], [1], [0, 0, 1, 1], [], []>} : vector<2x32xf32>, vector<32x128xf32>, vector<2x128xf32> -> vector<2x128xf32>
    %298 = arith.addf %296, %297 : vector<2x128xf32>
    %299 = vector.extract_strided_slice %298 {offsets = [0, 0], sizes = [2, 32], strides = [1, 1]} : vector<2x128xf32> to vector<2x32xf32>
    %300 = arith.negf %299 : vector<2x32xf32>
    %301 = math.exp %300 : vector<2x32xf32>
    %cst_81 = arith.constant 1.000000e+00 : f32
    %302 = vector.broadcast %cst_81 : f32 to vector<2x32xf32>
    %303 = arith.addf %302, %301 : vector<2x32xf32>
    %304 = arith.divf %302, %303 : vector<2x32xf32>
    %305 = vector.extract_strided_slice %298 {offsets = [0, 32], sizes = [2, 32], strides = [1, 1]} : vector<2x128xf32> to vector<2x32xf32>
    %306 = arith.negf %305 : vector<2x32xf32>
    %307 = math.exp %306 : vector<2x32xf32>
    %cst_82 = arith.constant 1.000000e+00 : f32
    %308 = vector.broadcast %cst_82 : f32 to vector<2x32xf32>
    %309 = arith.addf %308, %307 : vector<2x32xf32>
    %310 = arith.divf %308, %309 : vector<2x32xf32>
    %311 = vector.extract_strided_slice %298 {offsets = [0, 64], sizes = [2, 32], strides = [1, 1]} : vector<2x128xf32> to vector<2x32xf32>
    %312 = math.tanh %311 : vector<2x32xf32>
    %313 = vector.extract_strided_slice %298 {offsets = [0, 96], sizes = [2, 32], strides = [1, 1]} : vector<2x128xf32> to vector<2x32xf32>
    %314 = arith.negf %313 : vector<2x32xf32>
    %315 = math.exp %314 : vector<2x32xf32>
    %cst_83 = arith.constant 1.000000e+00 : f32
    %316 = vector.broadcast %cst_83 : f32 to vector<2x32xf32>
    %317 = arith.addf %316, %315 : vector<2x32xf32>
    %318 = arith.divf %316, %317 : vector<2x32xf32>
    %319 = arith.mulf %310, %295 : vector<2x32xf32>
    %320 = arith.mulf %304, %312 : vector<2x32xf32>
    %321 = arith.addf %319, %320 : vector<2x32xf32>
    %322 = math.tanh %321 : vector<2x32xf32>
    %323 = arith.mulf %318, %322 : vector<2x32xf32>
    %c1_i32 = arith.constant 1 : i32
    %324 = vector.broadcast %c1_i32 : i32 to vector<2x1xi32>
    %325 = arith.cmpi eq, %51, %324 : vector<2x1xi32>
    %326 = vector.shape_cast %325 : vector<2x1xi1> to vector<2x1xi1>
    %327 = vector.broadcast %326 : vector<2x1xi1> to vector<2x32xi1>
    %328 = arith.select %327, %323, %52 : vector<2x32xi1>, vector<2x32xf32>
    %329 = vector.extract_strided_slice %292 {offsets = [2, 0], sizes = [2, 128], strides = [1, 1]} : vector<16x128xf32> to vector<2x128xf32>
    %cst_84 = arith.constant dense<0.000000e+00> : vector<2x128xf32>
    %330 = tpu.matmul %323, %293, %cst_84 {dimension_numbers = #tpu.dot_dimension_numbers<[1], [0], [0], [1], [0, 0, 1, 1], [], []>} : vector<2x32xf32>, vector<32x128xf32>, vector<2x128xf32> -> vector<2x128xf32>
    %331 = arith.addf %329, %330 : vector<2x128xf32>
    %332 = vector.extract_strided_slice %331 {offsets = [0, 0], sizes = [2, 32], strides = [1, 1]} : vector<2x128xf32> to vector<2x32xf32>
    %333 = arith.negf %332 : vector<2x32xf32>
    %334 = math.exp %333 : vector<2x32xf32>
    %cst_85 = arith.constant 1.000000e+00 : f32
    %335 = vector.broadcast %cst_85 : f32 to vector<2x32xf32>
    %336 = arith.addf %335, %334 : vector<2x32xf32>
    %337 = arith.divf %335, %336 : vector<2x32xf32>
    %338 = vector.extract_strided_slice %331 {offsets = [0, 32], sizes = [2, 32], strides = [1, 1]} : vector<2x128xf32> to vector<2x32xf32>
    %339 = arith.negf %338 : vector<2x32xf32>
    %340 = math.exp %339 : vector<2x32xf32>
    %cst_86 = arith.constant 1.000000e+00 : f32
    %341 = vector.broadcast %cst_86 : f32 to vector<2x32xf32>
    %342 = arith.addf %341, %340 : vector<2x32xf32>
    %343 = arith.divf %341, %342 : vector<2x32xf32>
    %344 = vector.extract_strided_slice %331 {offsets = [0, 64], sizes = [2, 32], strides = [1, 1]} : vector<2x128xf32> to vector<2x32xf32>
    %345 = math.tanh %344 : vector<2x32xf32>
    %346 = vector.extract_strided_slice %331 {offsets = [0, 96], sizes = [2, 32], strides = [1, 1]} : vector<2x128xf32> to vector<2x32xf32>
    %347 = arith.negf %346 : vector<2x32xf32>
    %348 = math.exp %347 : vector<2x32xf32>
    %cst_87 = arith.constant 1.000000e+00 : f32
    %349 = vector.broadcast %cst_87 : f32 to vector<2x32xf32>
    %350 = arith.addf %349, %348 : vector<2x32xf32>
    %351 = arith.divf %349, %350 : vector<2x32xf32>
    %352 = arith.mulf %343, %321 : vector<2x32xf32>
    %353 = arith.mulf %337, %345 : vector<2x32xf32>
    %354 = arith.addf %352, %353 : vector<2x32xf32>
    %355 = math.tanh %354 : vector<2x32xf32>
    %356 = arith.mulf %351, %355 : vector<2x32xf32>
    %c2_i32 = arith.constant 2 : i32
    %357 = vector.broadcast %c2_i32 : i32 to vector<2x1xi32>
    %358 = arith.cmpi eq, %51, %357 : vector<2x1xi32>
    %359 = vector.shape_cast %358 : vector<2x1xi1> to vector<2x1xi1>
    %360 = vector.broadcast %359 : vector<2x1xi1> to vector<2x32xi1>
    %361 = arith.select %360, %356, %328 : vector<2x32xi1>, vector<2x32xf32>
    %362 = vector.extract_strided_slice %292 {offsets = [4, 0], sizes = [2, 128], strides = [1, 1]} : vector<16x128xf32> to vector<2x128xf32>
    %cst_88 = arith.constant dense<0.000000e+00> : vector<2x128xf32>
    %363 = tpu.matmul %356, %293, %cst_88 {dimension_numbers = #tpu.dot_dimension_numbers<[1], [0], [0], [1], [0, 0, 1, 1], [], []>} : vector<2x32xf32>, vector<32x128xf32>, vector<2x128xf32> -> vector<2x128xf32>
    %364 = arith.addf %362, %363 : vector<2x128xf32>
    %365 = vector.extract_strided_slice %364 {offsets = [0, 0], sizes = [2, 32], strides = [1, 1]} : vector<2x128xf32> to vector<2x32xf32>
    %366 = arith.negf %365 : vector<2x32xf32>
    %367 = math.exp %366 : vector<2x32xf32>
    %cst_89 = arith.constant 1.000000e+00 : f32
    %368 = vector.broadcast %cst_89 : f32 to vector<2x32xf32>
    %369 = arith.addf %368, %367 : vector<2x32xf32>
    %370 = arith.divf %368, %369 : vector<2x32xf32>
    %371 = vector.extract_strided_slice %364 {offsets = [0, 32], sizes = [2, 32], strides = [1, 1]} : vector<2x128xf32> to vector<2x32xf32>
    %372 = arith.negf %371 : vector<2x32xf32>
    %373 = math.exp %372 : vector<2x32xf32>
    %cst_90 = arith.constant 1.000000e+00 : f32
    %374 = vector.broadcast %cst_90 : f32 to vector<2x32xf32>
    %375 = arith.addf %374, %373 : vector<2x32xf32>
    %376 = arith.divf %374, %375 : vector<2x32xf32>
    %377 = vector.extract_strided_slice %364 {offsets = [0, 64], sizes = [2, 32], strides = [1, 1]} : vector<2x128xf32> to vector<2x32xf32>
    %378 = math.tanh %377 : vector<2x32xf32>
    %379 = vector.extract_strided_slice %364 {offsets = [0, 96], sizes = [2, 32], strides = [1, 1]} : vector<2x128xf32> to vector<2x32xf32>
    %380 = arith.negf %379 : vector<2x32xf32>
    %381 = math.exp %380 : vector<2x32xf32>
    %cst_91 = arith.constant 1.000000e+00 : f32
    %382 = vector.broadcast %cst_91 : f32 to vector<2x32xf32>
    %383 = arith.addf %382, %381 : vector<2x32xf32>
    %384 = arith.divf %382, %383 : vector<2x32xf32>
    %385 = arith.mulf %376, %354 : vector<2x32xf32>
    %386 = arith.mulf %370, %378 : vector<2x32xf32>
    %387 = arith.addf %385, %386 : vector<2x32xf32>
    %388 = math.tanh %387 : vector<2x32xf32>
    %389 = arith.mulf %384, %388 : vector<2x32xf32>
    %c3_i32 = arith.constant 3 : i32
    %390 = vector.broadcast %c3_i32 : i32 to vector<2x1xi32>
    %391 = arith.cmpi eq, %51, %390 : vector<2x1xi32>
    %392 = vector.shape_cast %391 : vector<2x1xi1> to vector<2x1xi1>
    %393 = vector.broadcast %392 : vector<2x1xi1> to vector<2x32xi1>
    %394 = arith.select %393, %389, %361 : vector<2x32xi1>, vector<2x32xf32>
    %395 = vector.extract_strided_slice %292 {offsets = [6, 0], sizes = [2, 128], strides = [1, 1]} : vector<16x128xf32> to vector<2x128xf32>
    %cst_92 = arith.constant dense<0.000000e+00> : vector<2x128xf32>
    %396 = tpu.matmul %389, %293, %cst_92 {dimension_numbers = #tpu.dot_dimension_numbers<[1], [0], [0], [1], [0, 0, 1, 1], [], []>} : vector<2x32xf32>, vector<32x128xf32>, vector<2x128xf32> -> vector<2x128xf32>
    %397 = arith.addf %395, %396 : vector<2x128xf32>
    %398 = vector.extract_strided_slice %397 {offsets = [0, 0], sizes = [2, 32], strides = [1, 1]} : vector<2x128xf32> to vector<2x32xf32>
    %399 = arith.negf %398 : vector<2x32xf32>
    %400 = math.exp %399 : vector<2x32xf32>
    %cst_93 = arith.constant 1.000000e+00 : f32
    %401 = vector.broadcast %cst_93 : f32 to vector<2x32xf32>
    %402 = arith.addf %401, %400 : vector<2x32xf32>
    %403 = arith.divf %401, %402 : vector<2x32xf32>
    %404 = vector.extract_strided_slice %397 {offsets = [0, 32], sizes = [2, 32], strides = [1, 1]} : vector<2x128xf32> to vector<2x32xf32>
    %405 = arith.negf %404 : vector<2x32xf32>
    %406 = math.exp %405 : vector<2x32xf32>
    %cst_94 = arith.constant 1.000000e+00 : f32
    %407 = vector.broadcast %cst_94 : f32 to vector<2x32xf32>
    %408 = arith.addf %407, %406 : vector<2x32xf32>
    %409 = arith.divf %407, %408 : vector<2x32xf32>
    %410 = vector.extract_strided_slice %397 {offsets = [0, 64], sizes = [2, 32], strides = [1, 1]} : vector<2x128xf32> to vector<2x32xf32>
    %411 = math.tanh %410 : vector<2x32xf32>
    %412 = vector.extract_strided_slice %397 {offsets = [0, 96], sizes = [2, 32], strides = [1, 1]} : vector<2x128xf32> to vector<2x32xf32>
    %413 = arith.negf %412 : vector<2x32xf32>
    %414 = math.exp %413 : vector<2x32xf32>
    %cst_95 = arith.constant 1.000000e+00 : f32
    %415 = vector.broadcast %cst_95 : f32 to vector<2x32xf32>
    %416 = arith.addf %415, %414 : vector<2x32xf32>
    %417 = arith.divf %415, %416 : vector<2x32xf32>
    %418 = arith.mulf %409, %387 : vector<2x32xf32>
    %419 = arith.mulf %403, %411 : vector<2x32xf32>
    %420 = arith.addf %418, %419 : vector<2x32xf32>
    %421 = math.tanh %420 : vector<2x32xf32>
    %422 = arith.mulf %417, %421 : vector<2x32xf32>
    %c4_i32 = arith.constant 4 : i32
    %423 = vector.broadcast %c4_i32 : i32 to vector<2x1xi32>
    %424 = arith.cmpi eq, %51, %423 : vector<2x1xi32>
    %425 = vector.shape_cast %424 : vector<2x1xi1> to vector<2x1xi1>
    %426 = vector.broadcast %425 : vector<2x1xi1> to vector<2x32xi1>
    %427 = arith.select %426, %422, %394 : vector<2x32xi1>, vector<2x32xf32>
    %428 = vector.extract_strided_slice %292 {offsets = [8, 0], sizes = [2, 128], strides = [1, 1]} : vector<16x128xf32> to vector<2x128xf32>
    %cst_96 = arith.constant dense<0.000000e+00> : vector<2x128xf32>
    %429 = tpu.matmul %422, %293, %cst_96 {dimension_numbers = #tpu.dot_dimension_numbers<[1], [0], [0], [1], [0, 0, 1, 1], [], []>} : vector<2x32xf32>, vector<32x128xf32>, vector<2x128xf32> -> vector<2x128xf32>
    %430 = arith.addf %428, %429 : vector<2x128xf32>
    %431 = vector.extract_strided_slice %430 {offsets = [0, 0], sizes = [2, 32], strides = [1, 1]} : vector<2x128xf32> to vector<2x32xf32>
    %432 = arith.negf %431 : vector<2x32xf32>
    %433 = math.exp %432 : vector<2x32xf32>
    %cst_97 = arith.constant 1.000000e+00 : f32
    %434 = vector.broadcast %cst_97 : f32 to vector<2x32xf32>
    %435 = arith.addf %434, %433 : vector<2x32xf32>
    %436 = arith.divf %434, %435 : vector<2x32xf32>
    %437 = vector.extract_strided_slice %430 {offsets = [0, 32], sizes = [2, 32], strides = [1, 1]} : vector<2x128xf32> to vector<2x32xf32>
    %438 = arith.negf %437 : vector<2x32xf32>
    %439 = math.exp %438 : vector<2x32xf32>
    %cst_98 = arith.constant 1.000000e+00 : f32
    %440 = vector.broadcast %cst_98 : f32 to vector<2x32xf32>
    %441 = arith.addf %440, %439 : vector<2x32xf32>
    %442 = arith.divf %440, %441 : vector<2x32xf32>
    %443 = vector.extract_strided_slice %430 {offsets = [0, 64], sizes = [2, 32], strides = [1, 1]} : vector<2x128xf32> to vector<2x32xf32>
    %444 = math.tanh %443 : vector<2x32xf32>
    %445 = vector.extract_strided_slice %430 {offsets = [0, 96], sizes = [2, 32], strides = [1, 1]} : vector<2x128xf32> to vector<2x32xf32>
    %446 = arith.negf %445 : vector<2x32xf32>
    %447 = math.exp %446 : vector<2x32xf32>
    %cst_99 = arith.constant 1.000000e+00 : f32
    %448 = vector.broadcast %cst_99 : f32 to vector<2x32xf32>
    %449 = arith.addf %448, %447 : vector<2x32xf32>
    %450 = arith.divf %448, %449 : vector<2x32xf32>
    %451 = arith.mulf %442, %420 : vector<2x32xf32>
    %452 = arith.mulf %436, %444 : vector<2x32xf32>
    %453 = arith.addf %451, %452 : vector<2x32xf32>
    %454 = math.tanh %453 : vector<2x32xf32>
    %455 = arith.mulf %450, %454 : vector<2x32xf32>
    %c5_i32 = arith.constant 5 : i32
    %456 = vector.broadcast %c5_i32 : i32 to vector<2x1xi32>
    %457 = arith.cmpi eq, %51, %456 : vector<2x1xi32>
    %458 = vector.shape_cast %457 : vector<2x1xi1> to vector<2x1xi1>
    %459 = vector.broadcast %458 : vector<2x1xi1> to vector<2x32xi1>
    %460 = arith.select %459, %455, %427 : vector<2x32xi1>, vector<2x32xf32>
    %461 = vector.extract_strided_slice %292 {offsets = [10, 0], sizes = [2, 128], strides = [1, 1]} : vector<16x128xf32> to vector<2x128xf32>
    %cst_100 = arith.constant dense<0.000000e+00> : vector<2x128xf32>
    %462 = tpu.matmul %455, %293, %cst_100 {dimension_numbers = #tpu.dot_dimension_numbers<[1], [0], [0], [1], [0, 0, 1, 1], [], []>} : vector<2x32xf32>, vector<32x128xf32>, vector<2x128xf32> -> vector<2x128xf32>
    %463 = arith.addf %461, %462 : vector<2x128xf32>
    %464 = vector.extract_strided_slice %463 {offsets = [0, 0], sizes = [2, 32], strides = [1, 1]} : vector<2x128xf32> to vector<2x32xf32>
    %465 = arith.negf %464 : vector<2x32xf32>
    %466 = math.exp %465 : vector<2x32xf32>
    %cst_101 = arith.constant 1.000000e+00 : f32
    %467 = vector.broadcast %cst_101 : f32 to vector<2x32xf32>
    %468 = arith.addf %467, %466 : vector<2x32xf32>
    %469 = arith.divf %467, %468 : vector<2x32xf32>
    %470 = vector.extract_strided_slice %463 {offsets = [0, 32], sizes = [2, 32], strides = [1, 1]} : vector<2x128xf32> to vector<2x32xf32>
    %471 = arith.negf %470 : vector<2x32xf32>
    %472 = math.exp %471 : vector<2x32xf32>
    %cst_102 = arith.constant 1.000000e+00 : f32
    %473 = vector.broadcast %cst_102 : f32 to vector<2x32xf32>
    %474 = arith.addf %473, %472 : vector<2x32xf32>
    %475 = arith.divf %473, %474 : vector<2x32xf32>
    %476 = vector.extract_strided_slice %463 {offsets = [0, 64], sizes = [2, 32], strides = [1, 1]} : vector<2x128xf32> to vector<2x32xf32>
    %477 = math.tanh %476 : vector<2x32xf32>
    %478 = vector.extract_strided_slice %463 {offsets = [0, 96], sizes = [2, 32], strides = [1, 1]} : vector<2x128xf32> to vector<2x32xf32>
    %479 = arith.negf %478 : vector<2x32xf32>
    %480 = math.exp %479 : vector<2x32xf32>
    %cst_103 = arith.constant 1.000000e+00 : f32
    %481 = vector.broadcast %cst_103 : f32 to vector<2x32xf32>
    %482 = arith.addf %481, %480 : vector<2x32xf32>
    %483 = arith.divf %481, %482 : vector<2x32xf32>
    %484 = arith.mulf %475, %453 : vector<2x32xf32>
    %485 = arith.mulf %469, %477 : vector<2x32xf32>
    %486 = arith.addf %484, %485 : vector<2x32xf32>
    %487 = math.tanh %486 : vector<2x32xf32>
    %488 = arith.mulf %483, %487 : vector<2x32xf32>
    %c6_i32 = arith.constant 6 : i32
    %489 = vector.broadcast %c6_i32 : i32 to vector<2x1xi32>
    %490 = arith.cmpi eq, %51, %489 : vector<2x1xi32>
    %491 = vector.shape_cast %490 : vector<2x1xi1> to vector<2x1xi1>
    %492 = vector.broadcast %491 : vector<2x1xi1> to vector<2x32xi1>
    %493 = arith.select %492, %488, %460 : vector<2x32xi1>, vector<2x32xf32>
    %494 = vector.extract_strided_slice %292 {offsets = [12, 0], sizes = [2, 128], strides = [1, 1]} : vector<16x128xf32> to vector<2x128xf32>
    %cst_104 = arith.constant dense<0.000000e+00> : vector<2x128xf32>
    %495 = tpu.matmul %488, %293, %cst_104 {dimension_numbers = #tpu.dot_dimension_numbers<[1], [0], [0], [1], [0, 0, 1, 1], [], []>} : vector<2x32xf32>, vector<32x128xf32>, vector<2x128xf32> -> vector<2x128xf32>
    %496 = arith.addf %494, %495 : vector<2x128xf32>
    %497 = vector.extract_strided_slice %496 {offsets = [0, 0], sizes = [2, 32], strides = [1, 1]} : vector<2x128xf32> to vector<2x32xf32>
    %498 = arith.negf %497 : vector<2x32xf32>
    %499 = math.exp %498 : vector<2x32xf32>
    %cst_105 = arith.constant 1.000000e+00 : f32
    %500 = vector.broadcast %cst_105 : f32 to vector<2x32xf32>
    %501 = arith.addf %500, %499 : vector<2x32xf32>
    %502 = arith.divf %500, %501 : vector<2x32xf32>
    %503 = vector.extract_strided_slice %496 {offsets = [0, 32], sizes = [2, 32], strides = [1, 1]} : vector<2x128xf32> to vector<2x32xf32>
    %504 = arith.negf %503 : vector<2x32xf32>
    %505 = math.exp %504 : vector<2x32xf32>
    %cst_106 = arith.constant 1.000000e+00 : f32
    %506 = vector.broadcast %cst_106 : f32 to vector<2x32xf32>
    %507 = arith.addf %506, %505 : vector<2x32xf32>
    %508 = arith.divf %506, %507 : vector<2x32xf32>
    %509 = vector.extract_strided_slice %496 {offsets = [0, 64], sizes = [2, 32], strides = [1, 1]} : vector<2x128xf32> to vector<2x32xf32>
    %510 = math.tanh %509 : vector<2x32xf32>
    %511 = vector.extract_strided_slice %496 {offsets = [0, 96], sizes = [2, 32], strides = [1, 1]} : vector<2x128xf32> to vector<2x32xf32>
    %512 = arith.negf %511 : vector<2x32xf32>
    %513 = math.exp %512 : vector<2x32xf32>
    %cst_107 = arith.constant 1.000000e+00 : f32
    %514 = vector.broadcast %cst_107 : f32 to vector<2x32xf32>
    %515 = arith.addf %514, %513 : vector<2x32xf32>
    %516 = arith.divf %514, %515 : vector<2x32xf32>
    %517 = arith.mulf %508, %486 : vector<2x32xf32>
    %518 = arith.mulf %502, %510 : vector<2x32xf32>
    %519 = arith.addf %517, %518 : vector<2x32xf32>
    %520 = math.tanh %519 : vector<2x32xf32>
    %521 = arith.mulf %516, %520 : vector<2x32xf32>
    %c7_i32 = arith.constant 7 : i32
    %522 = vector.broadcast %c7_i32 : i32 to vector<2x1xi32>
    %523 = arith.cmpi eq, %51, %522 : vector<2x1xi32>
    %524 = vector.shape_cast %523 : vector<2x1xi1> to vector<2x1xi1>
    %525 = vector.broadcast %524 : vector<2x1xi1> to vector<2x32xi1>
    %526 = arith.select %525, %521, %493 : vector<2x32xi1>, vector<2x32xf32>
    %527 = vector.extract_strided_slice %292 {offsets = [14, 0], sizes = [2, 128], strides = [1, 1]} : vector<16x128xf32> to vector<2x128xf32>
    %cst_108 = arith.constant dense<0.000000e+00> : vector<2x128xf32>
    %528 = tpu.matmul %521, %293, %cst_108 {dimension_numbers = #tpu.dot_dimension_numbers<[1], [0], [0], [1], [0, 0, 1, 1], [], []>} : vector<2x32xf32>, vector<32x128xf32>, vector<2x128xf32> -> vector<2x128xf32>
    %529 = arith.addf %527, %528 : vector<2x128xf32>
    %530 = vector.extract_strided_slice %529 {offsets = [0, 0], sizes = [2, 32], strides = [1, 1]} : vector<2x128xf32> to vector<2x32xf32>
    %531 = arith.negf %530 : vector<2x32xf32>
    %532 = math.exp %531 : vector<2x32xf32>
    %cst_109 = arith.constant 1.000000e+00 : f32
    %533 = vector.broadcast %cst_109 : f32 to vector<2x32xf32>
    %534 = arith.addf %533, %532 : vector<2x32xf32>
    %535 = arith.divf %533, %534 : vector<2x32xf32>
    %536 = vector.extract_strided_slice %529 {offsets = [0, 32], sizes = [2, 32], strides = [1, 1]} : vector<2x128xf32> to vector<2x32xf32>
    %537 = arith.negf %536 : vector<2x32xf32>
    %538 = math.exp %537 : vector<2x32xf32>
    %cst_110 = arith.constant 1.000000e+00 : f32
    %539 = vector.broadcast %cst_110 : f32 to vector<2x32xf32>
    %540 = arith.addf %539, %538 : vector<2x32xf32>
    %541 = arith.divf %539, %540 : vector<2x32xf32>
    %542 = vector.extract_strided_slice %529 {offsets = [0, 64], sizes = [2, 32], strides = [1, 1]} : vector<2x128xf32> to vector<2x32xf32>
    %543 = math.tanh %542 : vector<2x32xf32>
    %544 = vector.extract_strided_slice %529 {offsets = [0, 96], sizes = [2, 32], strides = [1, 1]} : vector<2x128xf32> to vector<2x32xf32>
    %545 = arith.negf %544 : vector<2x32xf32>
    %546 = math.exp %545 : vector<2x32xf32>
    %cst_111 = arith.constant 1.000000e+00 : f32
    %547 = vector.broadcast %cst_111 : f32 to vector<2x32xf32>
    %548 = arith.addf %547, %546 : vector<2x32xf32>
    %549 = arith.divf %547, %548 : vector<2x32xf32>
    %550 = arith.mulf %541, %519 : vector<2x32xf32>
    %551 = arith.mulf %535, %543 : vector<2x32xf32>
    %552 = arith.addf %550, %551 : vector<2x32xf32>
    %553 = math.tanh %552 : vector<2x32xf32>
    %554 = arith.mulf %549, %553 : vector<2x32xf32>
    %c8_i32 = arith.constant 8 : i32
    %555 = vector.broadcast %c8_i32 : i32 to vector<2x1xi32>
    %556 = arith.cmpi eq, %51, %555 : vector<2x1xi32>
    %557 = vector.shape_cast %556 : vector<2x1xi1> to vector<2x1xi1>
    %558 = vector.broadcast %557 : vector<2x1xi1> to vector<2x32xi1>
    %559 = arith.select %558, %554, %526 : vector<2x32xi1>, vector<2x32xf32>
    %c0_112 = arith.constant 0 : index
    %c0_113 = arith.constant 0 : index
    %560 = vector.load %arg16[%c0_112, %c0_113] : memref<32x128xf32, #tpu.memory_space<vmem>>, vector<32x128xf32>
    %cst_114 = arith.constant dense<0.000000e+00> : vector<2x128xf32>
    %561 = tpu.matmul %559, %560, %cst_114 {dimension_numbers = #tpu.dot_dimension_numbers<[1], [0], [0], [1], [0, 0, 1, 1], [], []>} : vector<2x32xf32>, vector<32x128xf32>, vector<2x128xf32> -> vector<2x128xf32>
    %c0_115 = arith.constant 0 : index
    %c0_116 = arith.constant 0 : index
    %562 = vector.load %arg17[%c0_115, %c0_116] : memref<1x128xf32, #tpu.memory_space<vmem>>, vector<1x128xf32>
    %563 = vector.broadcast %562 : vector<1x128xf32> to vector<2x128xf32>
    %564 = arith.addf %561, %563 : vector<2x128xf32>
    %565 = arith.negf %564 : vector<2x128xf32>
    %566 = math.exp %565 : vector<2x128xf32>
    %cst_117 = arith.constant 1.000000e+00 : f32
    %567 = vector.broadcast %cst_117 : f32 to vector<2x128xf32>
    %568 = arith.addf %567, %566 : vector<2x128xf32>
    %569 = arith.divf %567, %568 : vector<2x128xf32>
    %570 = vector.broadcast %9 : vector<1x128xf32> to vector<2x128xf32>
    %571 = arith.mulf %569, %570 : vector<2x128xf32>
    %572 = arith.truncf %569 : vector<2x128xf32> to vector<2x128xbf16>
    %cst_118 = arith.constant dense<0.000000e+00> : vector<2x128xf32>
    %573 = tpu.matmul %572, %3, %cst_118 {dimension_numbers = #tpu.dot_dimension_numbers<[1], [0], [0], [1], [0, 0, 1, 1], [], []>} : vector<2x128xbf16>, vector<128x128xbf16>, vector<2x128xf32> -> vector<2x128xf32>
    %cst_119 = arith.constant 0.000000e+00 : f32
    %574 = vector.broadcast %cst_119 : f32 to vector<2x128xf32>
    %575 = arith.maximumf %573, %574 : vector<2x128xf32>
    %576 = arith.addf %571, %575 : vector<2x128xf32>
    %cst_120 = arith.constant 5.000000e-01 : f32
    %577 = vector.broadcast %cst_120 : f32 to vector<2x128xf32>
    %578 = arith.mulf %577, %569 : vector<2x128xf32>
    %cst_121 = arith.constant 5.000000e-01 : f32
    %579 = vector.broadcast %cst_121 : f32 to vector<2x128xf32>
    %580 = arith.mulf %579, %576 : vector<2x128xf32>
    %581 = arith.addf %578, %580 : vector<2x128xf32>
    %c0_122 = arith.constant 0 : index
    %c0_123 = arith.constant 0 : index
    %582 = vector.load %arg18[%c0_122, %c0_123] : memref<2x128xf32, #tpu.memory_space<vmem>>, vector<2x128xf32>
    tpu.vector_store %arg18[%c0_122, %c0_123], %581 {strides = array<i32>} : memref<2x128xf32, #tpu.memory_space<vmem>>, vector<2x128xf32>,
    return
  }
}

</mosaic_0001>

<llo_original>
// kernel: gtn_rec_forward.1
$region0: #{gtn_rec_forward.1}
  #allocation0 [shape = 'u32[]', space=smem, size = 0x4, offset = 0x4, fixed_abs, tag = 'smem constant byte address 0x4 - core index']
  #allocation1 [shape = 'u32[72,128]{1,0:T(1,128)}', space=vmem, size = 0x9000, scoped, tag = 'internal scratch']
  #allocation2 [shape = 'f32[1]{0:T(128)S(6)}', space=smem, size = 0x200, scoped, tag = 'scoped memory for gtn_rec_forward.1']
  %s0 = inlined_call_operand.vmem [shape: s32[2,1], index: 0, kind: input, shape index: {}]
  %s1 = inlined_call_operand.<no memory space> [shape: f32[1], index: 1, kind: input, shape index: {}]
  %s2 = inlined_call_operand.vmem [shape: bf16[128,128], index: 2, kind: input, shape index: {}]
  %s3 = inlined_call_operand.vmem [shape: bf16[128,128], index: 3, kind: input, shape index: {}]
  %s4 = inlined_call_operand.vmem [shape: f32[16,128], index: 4, kind: input, shape index: {}]
  %s5 = inlined_call_operand.vmem [shape: f32[1,128], index: 5, kind: input, shape index: {}]
  %s6 = inlined_call_operand.vmem [shape: f32[1,128], index: 6, kind: input, shape index: {}]
  %s7 = inlined_call_operand.vmem [shape: f32[1,128], index: 7, kind: input, shape index: {}]
  %s8 = inlined_call_operand.vmem [shape: bf16[128,32], index: 8, kind: input, shape index: {}]
  %s9 = inlined_call_operand.vmem [shape: f32[1,32], index: 9, kind: input, shape index: {}]
  %s10 = inlined_call_operand.vmem [shape: bf16[32,128], index: 10, kind: input, shape index: {}]
  %s11 = inlined_call_operand.vmem [shape: f32[32,128], index: 11, kind: input, shape index: {}]
  %s12 = inlined_call_operand.vmem [shape: f32[1,128], index: 12, kind: input, shape index: {}]
  %s13 = inlined_call_operand.vmem [shape: bf16[32,128], index: 13, kind: input, shape index: {}]
  %s14 = inlined_call_operand.vmem [shape: f32[32,128], index: 14, kind: input, shape index: {}]
  %s15 = inlined_call_operand.vmem [shape: f32[1,128], index: 15, kind: input, shape index: {}]
  %s16 = inlined_call_operand.vmem [shape: f32[32,128], index: 16, kind: input, shape index: {}]
  %s17 = inlined_call_operand.vmem [shape: f32[1,128], index: 17, kind: input, shape index: {}]
  %s18 = inlined_call_operand.hbm [shape: f32[2,128], index: 18, kind: output, shape index: {}]
  %s19 = sld [smem:[#allocation0]]
  $region82: #{gtn_rec_forward.1} parent=0
    _
  %s21 = ssub.s32 1, %s19
  %s22 = scalar_select 0, %s21, %s19
  %23 = sst [smem:[#allocation2]] %s1
  $region1: #{gtn_rec_forward.1} parent=0
    #allocation3 [shape = 'u8[1024]{0}', space=vmem, size = 0x400, scoped, tag = 'output window, operand 0, single buffered']
    #allocation4 [shape = 's32[1]{0}', space=sflag, size = 0x4, scoped, tag = 'scoped memory for gtn_rec_forward.1']
    %24 = vsyncpa [#allocation4], 0
    // Predicated region
    $region2: #{gtn_rec_forward.1} parent=1 // pred_check
      _
    $region3: #{gtn_rec_forward.1} parent=1 // pred_check_branch
      %26 = sbr.rel (0) target = $region5
    $region4: #{gtn_rec_forward.1} parent=1 // pred_region
      _
    $region5: #{gtn_rec_forward.1} parent=1 // pred_fallthru
      _
    // Predicated region
    $region6: #{gtn_rec_forward.1} parent=1 // pred_check
      _
    $region7: #{gtn_rec_forward.1} parent=1 // pred_check_branch
      %28 = sbr.rel (0) target = $region9
    $region8: #{gtn_rec_forward.1} parent=1 // pred_region
      _
    $region9: #{gtn_rec_forward.1} parent=1 // pred_fallthru
      _
    // Predicated region
    $region10: #{gtn_rec_forward.1} parent=1 // pred_check
      _
    $region11: #{gtn_rec_forward.1} parent=1 // pred_check_branch
      %30 = sbr.rel (0) target = $region13
    $region12: #{gtn_rec_forward.1} parent=1 // pred_region
      _
    $region13: #{gtn_rec_forward.1} parent=1 // pred_fallthru
      _
    // Predicated region
    $region14: #{gtn_rec_forward.1} parent=1 // pred_check
      _
    $region15: #{gtn_rec_forward.1} parent=1 // pred_check_branch
      %32 = sbr.rel (0) target = $region17
    $region16: #{gtn_rec_forward.1} parent=1 // pred_region
      _
    $region17: #{gtn_rec_forward.1} parent=1 // pred_fallthru
      _
    // Predicated region
    $region18: #{gtn_rec_forward.1} parent=1 // pred_check
      _
    $region19: #{gtn_rec_forward.1} parent=1 // pred_check_branch
      %34 = sbr.rel (0) target = $region21
    $region20: #{gtn_rec_forward.1} parent=1 // pred_region
      _
    $region21: #{gtn_rec_forward.1} parent=1 // pred_fallthru
      _
    // Predicated region
    $region22: #{gtn_rec_forward.1} parent=1 // pred_check
      _
    $region23: #{gtn_rec_forward.1} parent=1 // pred_check_branch
      %36 = sbr.rel (0) target = $region25
    $region24: #{gtn_rec_forward.1} parent=1 // pred_region
      _
    $region25: #{gtn_rec_forward.1} parent=1 // pred_fallthru
      _
    // Predicated region
    $region26: #{gtn_rec_forward.1} parent=1 // pred_check
      _
    $region27: #{gtn_rec_forward.1} parent=1 // pred_check_branch
      %38 = sbr.rel (0) target = $region29
    $region28: #{gtn_rec_forward.1} parent=1 // pred_region
      _
    $region29: #{gtn_rec_forward.1} parent=1 // pred_fallthru
      _
    // Predicated region
    $region30: #{gtn_rec_forward.1} parent=1 // pred_check
      _
    $region31: #{gtn_rec_forward.1} parent=1 // pred_check_branch
      %40 = sbr.rel (0) target = $region33
    $region32: #{gtn_rec_forward.1} parent=1 // pred_region
      _
    $region33: #{gtn_rec_forward.1} parent=1 // pred_fallthru
      _
    // Predicated region
    $region34: #{gtn_rec_forward.1} parent=1 // pred_check
      _
    $region35: #{gtn_rec_forward.1} parent=1 // pred_check_branch
      %42 = sbr.rel (0) target = $region37
    $region36: #{gtn_rec_forward.1} parent=1 // pred_region
      _
    $region37: #{gtn_rec_forward.1} parent=1 // pred_fallthru
      _
    // Predicated region
    $region38: #{gtn_rec_forward.1} parent=1 // pred_check
      _
    $region39: #{gtn_rec_forward.1} parent=1 // pred_check_branch
      %44 = sbr.rel (0) target = $region41
    $region40: #{gtn_rec_forward.1} parent=1 // pred_region
      _
    $region41: #{gtn_rec_forward.1} parent=1 // pred_fallthru
      _
    // Predicated region
    $region42: #{gtn_rec_forward.1} parent=1 // pred_check
      _
    $region43: #{gtn_rec_forward.1} parent=1 // pred_check_branch
      %46 = sbr.rel (0) target = $region45
    $region44: #{gtn_rec_forward.1} parent=1 // pred_region
      _
    $region45: #{gtn_rec_forward.1} parent=1 // pred_fallthru
      _
    // Predicated region
    $region46: #{gtn_rec_forward.1} parent=1 // pred_check
      _
    $region47: #{gtn_rec_forward.1} parent=1 // pred_check_branch
      %48 = sbr.rel (0) target = $region49
    $region48: #{gtn_rec_forward.1} parent=1 // pred_region
      _
    $region49: #{gtn_rec_forward.1} parent=1 // pred_fallthru
      _
    // Predicated region
    $region50: #{gtn_rec_forward.1} parent=1 // pred_check
      _
    $region51: #{gtn_rec_forward.1} parent=1 // pred_check_branch
      %50 = sbr.rel (0) target = $region53
    $region52: #{gtn_rec_forward.1} parent=1 // pred_region
      _
    $region53: #{gtn_rec_forward.1} parent=1 // pred_fallthru
      _
    // Predicated region
    $region54: #{gtn_rec_forward.1} parent=1 // pred_check
      _
    $region55: #{gtn_rec_forward.1} parent=1 // pred_check_branch
      %52 = sbr.rel (0) target = $region57
    $region56: #{gtn_rec_forward.1} parent=1 // pred_region
      _
    $region57: #{gtn_rec_forward.1} parent=1 // pred_fallthru
      _
    // Predicated region
    $region58: #{gtn_rec_forward.1} parent=1 // pred_check
      _
    $region59: #{gtn_rec_forward.1} parent=1 // pred_check_branch
      %54 = sbr.rel (0) target = $region61
    $region60: #{gtn_rec_forward.1} parent=1 // pred_region
      _
    $region61: #{gtn_rec_forward.1} parent=1 // pred_fallthru
      _
    // Predicated region
    $region62: #{gtn_rec_forward.1} parent=1 // pred_check
      _
    $region63: #{gtn_rec_forward.1} parent=1 // pred_check_branch
      %56 = sbr.rel (0) target = $region65
    $region64: #{gtn_rec_forward.1} parent=1 // pred_region
      _
    $region65: #{gtn_rec_forward.1} parent=1 // pred_fallthru
      _
    // Predicated region
    $region66: #{gtn_rec_forward.1} parent=1 // pred_check
      _
    $region67: #{gtn_rec_forward.1} parent=1 // pred_check_branch
      %58 = sbr.rel (0) target = $region69
    $region68: #{gtn_rec_forward.1} parent=1 // pred_region
      _
    $region69: #{gtn_rec_forward.1} parent=1 // pred_fallthru
      _
    // Predicated region
    $region70: #{gtn_rec_forward.1} parent=1 // pred_check
      _
    $region71: #{gtn_rec_forward.1} parent=1 // pred_check_branch
      %60 = sbr.rel (0) target = $region73
    $region72: #{gtn_rec_forward.1} parent=1 // pred_region
      _
    $region73: #{gtn_rec_forward.1} parent=1 // pred_fallthru
      _
    %v62 = vld [vmem:[%s2] sm:$0xf]
    %v63 = vld [vmem:[%s2 + $0x4] sm:$0xf]
    %v64 = vld [vmem:[%s2 + $0x8] sm:$0xf]
    %v65 = vld [vmem:[%s2 + $0xc] sm:$0xf]
    %v66 = vld [vmem:[%s2 + $0x10] sm:$0xf]
    %v67 = vld [vmem:[%s2 + $0x14] sm:$0xf]
    %v68 = vld [vmem:[%s2 + $0x18] sm:$0xf]
    %v69 = vld [vmem:[%s2 + $0x1c] sm:$0xf]
    %v70 = vld [vmem:[%s2 + $0x20] sm:$0xf]
    %v71 = vld [vmem:[%s2 + $0x24] sm:$0xf]
    %v72 = vld [vmem:[%s2 + $0x28] sm:$0xf]
    %v73 = vld [vmem:[%s2 + $0x2c] sm:$0xf]
    %v74 = vld [vmem:[%s2 + $0x30] sm:$0xf]
    %v75 = vld [vmem:[%s2 + $0x34] sm:$0xf]
    %v76 = vld [vmem:[%s2 + $0x38] sm:$0xf]
    %v77 = vld [vmem:[%s2 + $0x3c] sm:$0xf]
    %v78 = vld [vmem:[%s3] sm:$0xf]
    %v79 = vld [vmem:[%s3 + $0x4] sm:$0xf]
    %v80 = vld [vmem:[%s3 + $0x8] sm:$0xf]
    %v81 = vld [vmem:[%s3 + $0xc] sm:$0xf]
    %v82 = vld [vmem:[%s3 + $0x10] sm:$0xf]
    %v83 = vld [vmem:[%s3 + $0x14] sm:$0xf]
    %v84 = vld [vmem:[%s3 + $0x18] sm:$0xf]
    %v85 = vld [vmem:[%s3 + $0x1c] sm:$0xf]
    %v86 = vld [vmem:[%s3 + $0x20] sm:$0xf]
    %v87 = vld [vmem:[%s3 + $0x24] sm:$0xf]
    %v88 = vld [vmem:[%s3 + $0x28] sm:$0xf]
    %v89 = vld [vmem:[%s3 + $0x2c] sm:$0xf]
    %v90 = vld [vmem:[%s3 + $0x30] sm:$0xf]
    %v91 = vld [vmem:[%s3 + $0x34] sm:$0xf]
    %v92 = vld [vmem:[%s3 + $0x38] sm:$0xf]
    %v93 = vld [vmem:[%s3 + $0x3c] sm:$0xf]
    %v110 = vunpack.c.l.b16 %v62
    %v111 = vunpack.c.l.b16 %v63
    %v112 = vunpack.c.l.b16 %v64
    %v113 = vunpack.c.l.b16 %v65
    %v114 = vunpack.c.l.b16 %v66
    %v115 = vunpack.c.l.b16 %v67
    %v116 = vunpack.c.l.b16 %v68
    %v117 = vunpack.c.l.b16 %v69
    %v118 = vunpack.c.l.b16 %v70
    %v119 = vunpack.c.l.b16 %v71
    %v120 = vunpack.c.l.b16 %v72
    %v121 = vunpack.c.l.b16 %v73
    %v122 = vunpack.c.l.b16 %v74
    %v123 = vunpack.c.l.b16 %v75
    %v124 = vunpack.c.l.b16 %v76
    %v125 = vunpack.c.l.b16 %v77
    %v126 = vpack.c.b16 %v111, %v110
    %v127 = vpack.c.b16 %v113, %v112
    %v128 = vpack.c.b16 %v115, %v114
    %v129 = vpack.c.b16 %v117, %v116
    %v130 = vpack.c.b16 %v119, %v118
    %v131 = vpack.c.b16 %v121, %v120
    %v132 = vpack.c.b16 %v123, %v122
    %v133 = vpack.c.b16 %v125, %v124
    %v158 = vunpack.c.l.b16 %v78
    %v159 = vunpack.c.l.b16 %v79
    %v160 = vunpack.c.l.b16 %v80
    %v161 = vunpack.c.l.b16 %v81
    %v162 = vunpack.c.l.b16 %v82
    %v163 = vunpack.c.l.b16 %v83
    %v164 = vunpack.c.l.b16 %v84
    %v165 = vunpack.c.l.b16 %v85
    %v166 = vunpack.c.l.b16 %v86
    %v167 = vunpack.c.l.b16 %v87
    %v168 = vunpack.c.l.b16 %v88
    %v169 = vunpack.c.l.b16 %v89
    %v170 = vunpack.c.l.b16 %v90
    %v171 = vunpack.c.l.b16 %v91
    %v172 = vunpack.c.l.b16 %v92
    %v173 = vunpack.c.l.b16 %v93
    %v174 = vpack.c.b16 %v159, %v158
    %v175 = vpack.c.b16 %v161, %v160
    %v176 = vpack.c.b16 %v163, %v162
    %v177 = vpack.c.b16 %v165, %v164
    %v178 = vpack.c.b16 %v167, %v166
    %v179 = vpack.c.b16 %v169, %v168
    %v180 = vpack.c.b16 %v171, %v170
    %v181 = vpack.c.b16 %v173, %v172
    %190 = vmatpush.bf16.msra.mxu0 %v181
    %191 = vmatpush.bf16.msra.mxu0 %v180
    %192 = vmatpush.bf16.msra.mxu0 %v179
    %193 = vmatpush.bf16.msra.mxu0 %v178
    %194 = vmatpush.bf16.msra.mxu0 %v177
    %195 = vmatpush.bf16.msra.mxu0 %v176
    %196 = vmatpush.bf16.msra.mxu0 %v175
    %197 = vmatpush.bf16.msra.mxu0 %v174
    %198 = vmatmul.bf16.gmra.mxu0 %v126
    %v199 = vpop.f32.mrf.mxu0
    %v200 = vadd.f32 0.0, %v199
    %v201 = vpop.f32.mrf.mxu0
    %v202 = vadd.f32 0.0, %v201
    %203 = vmatmul.bf16.gmra.mxu0 %v127
    %v204 = vpop.f32.mrf.mxu0
    %v205 = vadd.f32 0.0, %v204
    %v206 = vpop.f32.mrf.mxu0
    %v207 = vadd.f32 0.0, %v206
    %208 = vmatmul.bf16.gmra.mxu0 %v128
    %v209 = vpop.f32.mrf.mxu0
    %v210 = vadd.f32 0.0, %v209
    %v211 = vpop.f32.mrf.mxu0
    %v212 = vadd.f32 0.0, %v211
    %213 = vmatmul.bf16.gmra.mxu0 %v129
    %v214 = vpop.f32.mrf.mxu0
    %v215 = vadd.f32 0.0, %v214
    %v216 = vpop.f32.mrf.mxu0
    %v217 = vadd.f32 0.0, %v216
    %218 = vmatmul.bf16.gmra.mxu0 %v130
    %v219 = vpop.f32.mrf.mxu0
    %v220 = vadd.f32 0.0, %v219
    %v221 = vpop.f32.mrf.mxu0
    %v222 = vadd.f32 0.0, %v221
    %223 = vmatmul.bf16.gmra.mxu0 %v131
    %v224 = vpop.f32.mrf.mxu0
    %v225 = vadd.f32 0.0, %v224
    %v226 = vpop.f32.mrf.mxu0
    %v227 = vadd.f32 0.0, %v226
    %228 = vmatmul.bf16.gmra.mxu0 %v132
    %v229 = vpop.f32.mrf.mxu0
    %v230 = vadd.f32 0.0, %v229
    %v231 = vpop.f32.mrf.mxu0
    %v232 = vadd.f32 0.0, %v231
    %233 = vmatmul.bf16.gmra.mxu0 %v133
    %v234 = vpop.f32.mrf.mxu0
    %v235 = vadd.f32 0.0, %v234
    %v236 = vpop.f32.mrf.mxu0
    %v237 = vadd.f32 0.0, %v236
    %238 = vdwg.mxu0
    %v239 = vpack.c.bf16 %v202, %v200
    %v240 = vpack.c.bf16 %v207, %v205
    %v241 = vpack.c.bf16 %v212, %v210
    %v242 = vpack.c.bf16 %v217, %v215
    %v243 = vpack.c.bf16 %v222, %v220
    %v244 = vpack.c.bf16 %v227, %v225
    %v245 = vpack.c.bf16 %v232, %v230
    %v246 = vpack.c.bf16 %v237, %v235
    %v247 = vld [vmem:[%s4] sm:$0xff]
    %v248 = vld [vmem:[%s4 + $0x8] sm:$0xff]
    %v249 = vpack.c.bf16 %v248, %v247
    %250 = vmatpush.bf16.msra.mxu0 %v246
    %251 = vmatpush.bf16.msra.mxu0 %v245
    %252 = vmatpush.bf16.msra.mxu0 %v244
    %253 = vmatpush.bf16.msra.mxu0 %v243
    %254 = vmatpush.bf16.msra.mxu0 %v242
    %255 = vmatpush.bf16.msra.mxu0 %v241
    %256 = vmatpush.bf16.msra.mxu0 %v240
    %257 = vmatpush.bf16.msra.mxu0 %v239
    %258 = vmatmul.bf16.gmra.mxu0 %v249
    %v259 = vpop.f32.mrf.mxu0
    %v260 = vadd.f32 0.0, %v259
    %v261 = vpop.f32.mrf.mxu0
    %v262 = vadd.f32 0.0, %v261
    %263 = vdwg.mxu0
    %v264 = vld [vmem:[%s5] sm:$0x1]
    %v265 = vmax.f32 %v264, 0.0
    %v267 = vperm.slane %v265, 0
    %v269 = vmul.f32 %v247, %v267
    %v270 = vmul.f32 %v248, %v267
    %s271 = sld [smem:[#allocation2]]
    %v272 = vstv %s271
    %v273 = vsub.f32 %v260, %v272
    %v274 = vsub.f32 %v262, %v272
    %v275 = vmax.f32 %v273, 0.0
    %v276 = vmax.f32 %v274, 0.0
    %v277 = vadd.f32 %v269, %v275
    %v278 = vadd.f32 %v270, %v276
    %v279 = vadd.f32 %v277, %v278
    %v280 = vrot.slane %v279, 4
    %v281 = vadd.f32 %v279, %v280
    %v282 = vrot.slane %v281, 2
    %v283 = vadd.f32 %v281, %v282
    %v284 = vrot.slane %v283, 1
    %v285 = vadd.f32 %v283, %v284
    %v286 = vmul.f32 %v285, 0.0625
    %v287 = vmul.f32 %v277, %v277
    %v288 = vmul.f32 %v278, %v278
    %v289 = vadd.f32 %v287, %v288
    %v290 = vrot.slane %v289, 4
    %v291 = vadd.f32 %v289, %v290
    %v292 = vrot.slane %v291, 2
    %v293 = vadd.f32 %v291, %v292
    %v294 = vrot.slane %v293, 1
    %v295 = vadd.f32 %v293, %v294
    %v296 = vmul.f32 %v295, 0.0625
    %v297 = vmul.f32 %v286, %v286
    %v298 = vsub.f32 %v296, %v297
    %v299 = vmax.f32 %v298, 0.0
    %v300 = vadd.f32 %v299, 1e-05
    %v301 = vrsqrt.pop %v300
    %v302 = vmul.f32 %v301, %v300
    %v303 = vmul.f32 %v302, %v301
    %v304 = vmul.f32 0.5, %v303
    %v305 = vsub.f32 1.5, %v304
    %v306 = vmul.f32 %v301, %v305
    %vm307 = vweird.f32 %v300
    %vm308 = vweird.f32 %v301
    %vm309 = vmor %vm307, %vm308
    %v310 = vsel %vm309, %v301, %v306
    %v311 = vld [vmem:[%s6] sm:$0x1]
    %v312 = vmul.f32 %v310, %v311
    %v313 = vld [vmem:[%s7] sm:$0x1]
    %v314 = vmul.f32 %v286, %v312
    %v315 = vsub.f32 %v313, %v314
    %v316 = vperm.slane %v312, 0
    %v317 = vmul.f32 %v277, %v316
    %v318 = vmul.f32 %v278, %v316
    %v320 = vperm.slane %v315, 0
    %v322 = vadd.f32 %v317, %v320
    %v323 = vadd.f32 %v318, %v320
    %v324 = vpack.c.bf16 %v323, %v322
    %v325 = vld [vmem:[%s8] sm:$0xf]
    %v326 = vld [vmem:[%s8 + $0x4] sm:$0xf]
    %v327 = vld [vmem:[%s8 + $0x8] sm:$0xf]
    %v328 = vld [vmem:[%s8 + $0xc] sm:$0xf]
    %v329 = vld [vmem:[%s8 + $0x10] sm:$0xf]
    %v330 = vld [vmem:[%s8 + $0x14] sm:$0xf]
    %v331 = vld [vmem:[%s8 + $0x18] sm:$0xf]
    %v332 = vld [vmem:[%s8 + $0x1c] sm:$0xf]
    %v333 = vld [vmem:[%s8 + $0x20] sm:$0xf]
    %v334 = vld [vmem:[%s8 + $0x24] sm:$0xf]
    %v335 = vld [vmem:[%s8 + $0x28] sm:$0xf]
    %v336 = vld [vmem:[%s8 + $0x2c] sm:$0xf]
    %v337 = vld [vmem:[%s8 + $0x30] sm:$0xf]
    %v338 = vld [vmem:[%s8 + $0x34] sm:$0xf]
    %v339 = vld [vmem:[%s8 + $0x38] sm:$0xf]
    %v340 = vld [vmem:[%s8 + $0x3c] sm:$0xf]
    %v341 = vld [vmem:[%s9] sm:$0x1]
    %v343 = vperm.slane %v341, 0
    %v361 = vunpack.c.l.b16 %v325
    %v362 = vunpack.c.l.b16 %v326
    %v363 = vunpack.c.l.b16 %v327
    %v364 = vunpack.c.l.b16 %v328
    %v365 = vunpack.c.l.b16 %v329
    %v366 = vunpack.c.l.b16 %v330
    %v367 = vunpack.c.l.b16 %v331
    %v368 = vunpack.c.l.b16 %v332
    %v369 = vunpack.c.l.b16 %v333
    %v370 = vunpack.c.l.b16 %v334
    %v371 = vunpack.c.l.b16 %v335
    %v372 = vunpack.c.l.b16 %v336
    %v373 = vunpack.c.l.b16 %v337
    %v374 = vunpack.c.l.b16 %v338
    %v375 = vunpack.c.l.b16 %v339
    %v376 = vunpack.c.l.b16 %v340
    %v377 = vpack.c.b16 %v362, %v361
    %v378 = vpack.c.b16 %v364, %v363
    %v379 = vpack.c.b16 %v366, %v365
    %v380 = vpack.c.b16 %v368, %v367
    %v381 = vpack.c.b16 %v370, %v369
    %v382 = vpack.c.b16 %v372, %v371
    %v383 = vpack.c.b16 %v374, %v373
    %v384 = vpack.c.b16 %v376, %v375
    %393 = vmatpush.bf16.msra.mxu0 %v384
    %394 = vmatpush.bf16.msra.mxu0 %v383
    %395 = vmatpush.bf16.msra.mxu0 %v382
    %396 = vmatpush.bf16.msra.mxu0 %v381
    %397 = vmatpush.bf16.msra.mxu0 %v380
    %398 = vmatpush.bf16.msra.mxu0 %v379
    %399 = vmatpush.bf16.msra.mxu0 %v378
    %400 = vmatpush.bf16.msra.mxu0 %v377
    %401 = vmatmul.bf16.gmra.mxu0 %v324
    %v402 = vpop.f32.mrf.mxu0
    %v403 = vadd.f32 %v343, %v402
    %v404 = vpop.f32.mrf.mxu0
    %v405 = vadd.f32 %v343, %v404
    %406 = vdwg.mxu0
    %v407 = vmax.f32 %v403, 0.0
    %v408 = vmax.f32 %v405, 0.0
    %v409 = vld [vmem:[%s0] sm:$0x3]
    %v410 = vpack.c.bf16 %v408, %v407
    %v411 = vld [vmem:[%s10] sm:$0xf]
    %v412 = vld [vmem:[%s10 + $0x4] sm:$0xf]
    %v413 = vld [vmem:[%s10 + $0x8] sm:$0xf]
    %v414 = vld [vmem:[%s10 + $0xc] sm:$0xf]
    %v415 = vld [vmem:[%s12] sm:$0x1]
    %v417 = vperm.slane %v415, 0
    %v423 = vunpack.c.l.b16 %v411
    %v424 = vunpack.c.l.b16 %v412
    %v425 = vunpack.c.l.b16 %v413
    %v426 = vunpack.c.l.b16 %v414
    %v427 = vpack.c.b16 %v424, %v423
    %v428 = vpack.c.b16 %v426, %v425
    %vm431 = vcmask 261120
    %v433 = vsel %vm431, %v410, 0
    %435 = vmatpush.bf16.msra.mxu0 0
    %436 = vmatpush.bf16.msra.mxu0 0
    %437 = vmatpush.bf16.msra.mxu0 0
    %438 = vmatpush.bf16.msra.mxu0 0
    %439 = vmatpush.bf16.msra.mxu0 0
    %440 = vmatpush.bf16.msra.mxu0 0
    %441 = vmatpush.bf16.msra.mxu0 %v428
    %442 = vmatpush.bf16.msra.mxu0 %v427
    %443 = vmatmul.bf16.gmra.mxu0 %v433
    %v444 = vpop.f32.mrf.mxu0
    %v445 = vadd.f32 %v417, %v444
    %v446 = vpop.f32.mrf.mxu0
    %v447 = vadd.f32 %v417, %v446
    %448 = vdwg.mxu0
    %v449 = vld [vmem:[%s11] sm:$0xff]
    %v450 = vld [vmem:[%s11 + $0x8] sm:$0xff]
    %v451 = vld [vmem:[%s11 + $0x10] sm:$0xff]
    %v452 = vld [vmem:[%s11 + $0x18] sm:$0xff]
    %v454 = vsel %vm431, 0.0, 0
    %456 = vmatpush.msra.mxu0 0.0
    %457 = vmatpush.msra.mxu0 0.0
    %458 = vmatpush.msra.mxu0 0.0
    %459 = vmatpush.msra.mxu0 0.0
    %460 = vmatpush.msra.mxu0 0.0
    %461 = vmatpush.msra.mxu0 0.0
    %462 = vmatpush.msra.mxu0 0.0
    %463 = vmatpush.msra.mxu0 0.0
    %464 = vmatpush.msra.mxu0 0.0
    %465 = vmatpush.msra.mxu0 0.0
    %466 = vmatpush.msra.mxu0 0.0
    %467 = vmatpush.msra.mxu0 0.0
    %468 = vmatpush.msra.mxu0 %v452
    %469 = vmatpush.msra.mxu0 %v451
    %470 = vmatpush.msra.mxu0 %v450
    %471 = vmatpush.msra.mxu0 %v449
    %472 = vmatmul.f32.gmra.mxu0 %v454
    %v473 = vpop.f32.mrf.mxu0
    %v474 = vadd.f32 0.0, %v473
    %475 = vdwg.mxu0
    %v476 = vadd.f32 %v445, %v474
    %v477 = vxor.u32 %v476, 2147483648
    %v478 = vmul.f32 %v477, 1.442695
    %v479 = vpow.pop %v478
    %v480 = vadd.f32 %v479, 1.0
    %v481 = vrcp.pop %v480
    %v482 = vmul.f32 %v480, %v481
    %v483 = vsub.f32 1.0, %v482
    %v484 = vmul.f32 %v481, %v483
    %v485 = vadd.f32 %v481, %v484
    %vm486 = vweird.f32 %v480
    %vm487 = vweird.f32 %v481
    %vm488 = vmor %vm486, %vm487
    %v489 = vsel %vm488, %v481, %v485
    %v490 = vand.u32 2147483647, %v480
    %vm491 = vcmp.eq.f32.partialorder %v490, 8.507059e+37
    %v492 = vand.u32 %v480, 2147483648
    %v493 = vor.u32 1.1754944e-38, %v492
    %v494 = vsel %vm491, %v493, %v489
    %v495 = vmul.f32 1.0, %v494
    %v496 = vtanh.pop %v476
    %v497 = vmul.f32 %v495, 0.0
    %499 = vrot.lane.b32.xlu0 %v496, 64
    %v500 = vpop.permute.xlu0 %499
    %v502 = vmul.f32 %v495, %v500
    %504 = vrot.lane.b32.xlu0 %v502, 32
    %v505 = vpop.permute.xlu0 %504
    %v507 = vadd.f32 %v497, %v505
    %v508 = vtanh.pop %v507
    %510 = vrot.lane.b32.xlu0 %v508, 64
    %v511 = vpop.permute.xlu0 %510
    %v513 = vmul.f32 %v495, %v511
    %515 = vrot.lane.b32.xlu0 %v513, 32
    %v516 = vpop.permute.xlu0 %515
    %v517 = vsel %vm431, %v516, 0
    %519 = vmatpush.msra.mxu0 0.0
    %520 = vmatpush.msra.mxu0 0.0
    %521 = vmatpush.msra.mxu0 0.0
    %522 = vmatpush.msra.mxu0 0.0
    %523 = vmatpush.msra.mxu0 0.0
    %524 = vmatpush.msra.mxu0 0.0
    %525 = vmatpush.msra.mxu0 0.0
    %526 = vmatpush.msra.mxu0 0.0
    %527 = vmatpush.msra.mxu0 0.0
    %528 = vmatpush.msra.mxu0 0.0
    %529 = vmatpush.msra.mxu0 0.0
    %530 = vmatpush.msra.mxu0 0.0
    %531 = vmatpush.msra.mxu0 %v452
    %532 = vmatpush.msra.mxu0 %v451
    %533 = vmatpush.msra.mxu0 %v450
    %534 = vmatpush.msra.mxu0 %v449
    %535 = vmatmul.f32.gmra.mxu0 %v517
    %v536 = vpop.f32.mrf.mxu0
    %v537 = vadd.f32 0.0, %v536
    %538 = vdwg.mxu0
    %v540 = vrot.slane %v537, 6
    %v542 = vadd.f32 %v445, %v540
    %v543 = vxor.u32 %v542, 2147483648
    %v544 = vmul.f32 %v543, 1.442695
    %v545 = vpow.pop %v544
    %v546 = vadd.f32 %v545, 1.0
    %v547 = vrcp.pop %v546
    %v548 = vmul.f32 %v546, %v547
    %v549 = vsub.f32 1.0, %v548
    %v550 = vmul.f32 %v547, %v549
    %v551 = vadd.f32 %v547, %v550
    %vm552 = vweird.f32 %v546
    %vm553 = vweird.f32 %v547
    %vm554 = vmor %vm552, %vm553
    %v555 = vsel %vm554, %v547, %v551
    %v556 = vand.u32 2147483647, %v546
    %vm557 = vcmp.eq.f32.partialorder %v556, 8.507059e+37
    %v558 = vand.u32 %v546, 2147483648
    %v559 = vor.u32 1.1754944e-38, %v558
    %v560 = vsel %vm557, %v559, %v555
    %v561 = vmul.f32 1.0, %v560
    %v562 = vtanh.pop %v542
    %v564 = vrot.slane %v507, 6
    %v566 = vmul.f32 %v561, %v564
    %568 = vrot.lane.b32.xlu0 %v562, 64
    %v569 = vpop.permute.xlu0 %568
    %v571 = vmul.f32 %v561, %v569
    %573 = vrot.lane.b32.xlu0 %v571, 32
    %v574 = vpop.permute.xlu0 %573
    %v576 = vadd.f32 %v566, %v574
    %v577 = vtanh.pop %v576
    %579 = vrot.lane.b32.xlu0 %v577, 64
    %v580 = vpop.permute.xlu0 %579
    %v582 = vmul.f32 %v561, %v580
    %v584 = vrot.slane %v582, 2
    %585 = vrot.lane.b32.xlu0 %v584, 32
    %v586 = vpop.permute.xlu0 %585
    %v587 = vsel %vm431, %v586, 0
    %589 = vmatpush.msra.mxu0 0.0
    %590 = vmatpush.msra.mxu0 0.0
    %591 = vmatpush.msra.mxu0 0.0
    %592 = vmatpush.msra.mxu0 0.0
    %593 = vmatpush.msra.mxu0 0.0
    %594 = vmatpush.msra.mxu0 0.0
    %595 = vmatpush.msra.mxu0 0.0
    %596 = vmatpush.msra.mxu0 0.0
    %597 = vmatpush.msra.mxu0 0.0
    %598 = vmatpush.msra.mxu0 0.0
    %599 = vmatpush.msra.mxu0 0.0
    %600 = vmatpush.msra.mxu0 0.0
    %601 = vmatpush.msra.mxu0 %v452
    %602 = vmatpush.msra.mxu0 %v451
    %603 = vmatpush.msra.mxu0 %v450
    %604 = vmatpush.msra.mxu0 %v449
    %605 = vmatmul.f32.gmra.mxu0 %v587
    %v606 = vpop.f32.mrf.mxu0
    %v607 = vadd.f32 0.0, %v606
    %608 = vdwg.mxu0
    %v610 = vrot.slane %v607, 4
    %v612 = vadd.f32 %v445, %v610
    %v613 = vxor.u32 %v612, 2147483648
    %v614 = vmul.f32 %v613, 1.442695
    %v615 = vpow.pop %v614
    %v616 = vadd.f32 %v615, 1.0
    %v617 = vrcp.pop %v616
    %v618 = vmul.f32 %v616, %v617
    %v619 = vsub.f32 1.0, %v618
    %v620 = vmul.f32 %v617, %v619
    %v621 = vadd.f32 %v617, %v620
    %vm622 = vweird.f32 %v616
    %vm623 = vweird.f32 %v617
    %vm624 = vmor %vm622, %vm623
    %v625 = vsel %vm624, %v617, %v621
    %v626 = vand.u32 2147483647, %v616
    %vm627 = vcmp.eq.f32.partialorder %v626, 8.507059e+37
    %v628 = vand.u32 %v616, 2147483648
    %v629 = vor.u32 1.1754944e-38, %v628
    %v630 = vsel %vm627, %v629, %v625
    %v631 = vmul.f32 1.0, %v630
    %v632 = vtanh.pop %v612
    %v634 = vrot.slane %v576, 6
    %v636 = vmul.f32 %v631, %v634
    %638 = vrot.lane.b32.xlu0 %v632, 64
    %v639 = vpop.permute.xlu0 %638
    %v641 = vmul.f32 %v631, %v639
    %643 = vrot.lane.b32.xlu0 %v641, 32
    %v644 = vpop.permute.xlu0 %643
    %v646 = vadd.f32 %v636, %v644
    %v647 = vtanh.pop %v646
    %649 = vrot.lane.b32.xlu0 %v647, 64
    %v650 = vpop.permute.xlu0 %649
    %v652 = vmul.f32 %v631, %v650
    %v654 = vrot.slane %v652, 4
    %655 = vrot.lane.b32.xlu0 %v654, 32
    %v656 = vpop.permute.xlu0 %655
    %v657 = vsel %vm431, %v656, 0
    %659 = vmatpush.msra.mxu0 0.0
    %660 = vmatpush.msra.mxu0 0.0
    %661 = vmatpush.msra.mxu0 0.0
    %662 = vmatpush.msra.mxu0 0.0
    %663 = vmatpush.msra.mxu0 0.0
    %664 = vmatpush.msra.mxu0 0.0
    %665 = vmatpush.msra.mxu0 0.0
    %666 = vmatpush.msra.mxu0 0.0
    %667 = vmatpush.msra.mxu0 0.0
    %668 = vmatpush.msra.mxu0 0.0
    %669 = vmatpush.msra.mxu0 0.0
    %670 = vmatpush.msra.mxu0 0.0
    %671 = vmatpush.msra.mxu0 %v452
    %672 = vmatpush.msra.mxu0 %v451
    %673 = vmatpush.msra.mxu0 %v450
    %674 = vmatpush.msra.mxu0 %v449
    %675 = vmatmul.f32.gmra.mxu0 %v657
    %v676 = vpop.f32.mrf.mxu0
    %v677 = vadd.f32 0.0, %v676
    %678 = vdwg.mxu0
    %v680 = vrot.slane %v677, 2
    %v682 = vadd.f32 %v445, %v680
    %v683 = vxor.u32 %v682, 2147483648
    %v684 = vmul.f32 %v683, 1.442695
    %v685 = vpow.pop %v684
    %v686 = vadd.f32 %v685, 1.0
    %v687 = vrcp.pop %v686
    %v688 = vmul.f32 %v686, %v687
    %v689 = vsub.f32 1.0, %v688
    %v690 = vmul.f32 %v687, %v689
    %v691 = vadd.f32 %v687, %v690
    %vm692 = vweird.f32 %v686
    %vm693 = vweird.f32 %v687
    %vm694 = vmor %vm692, %vm693
    %v695 = vsel %vm694, %v687, %v691
    %v696 = vand.u32 2147483647, %v686
    %vm697 = vcmp.eq.f32.partialorder %v696, 8.507059e+37
    %v698 = vand.u32 %v686, 2147483648
    %v699 = vor.u32 1.1754944e-38, %v698
    %v700 = vsel %vm697, %v699, %v695
    %v701 = vmul.f32 1.0, %v700
    %v702 = vtanh.pop %v682
    %v704 = vrot.slane %v646, 6
    %v706 = vmul.f32 %v701, %v704
    %708 = vrot.lane.b32.xlu0 %v702, 64
    %v709 = vpop.permute.xlu0 %708
    %v711 = vmul.f32 %v701, %v709
    %713 = vrot.lane.b32.xlu0 %v711, 32
    %v714 = vpop.permute.xlu0 %713
    %v716 = vadd.f32 %v706, %v714
    %v717 = vtanh.pop %v716
    %719 = vrot.lane.b32.xlu0 %v717, 64
    %v720 = vpop.permute.xlu0 %719
    %v722 = vmul.f32 %v701, %v720
    %v724 = vrot.slane %v722, 6
    %725 = vrot.lane.b32.xlu0 %v724, 32
    %v726 = vpop.permute.xlu0 %725
    %v727 = vsel %vm431, %v726, 0
    %729 = vmatpush.msra.mxu0 0.0
    %730 = vmatpush.msra.mxu0 0.0
    %731 = vmatpush.msra.mxu0 0.0
    %732 = vmatpush.msra.mxu0 0.0
    %733 = vmatpush.msra.mxu0 0.0
    %734 = vmatpush.msra.mxu0 0.0
    %735 = vmatpush.msra.mxu0 0.0
    %736 = vmatpush.msra.mxu0 0.0
    %737 = vmatpush.msra.mxu0 0.0
    %738 = vmatpush.msra.mxu0 0.0
    %739 = vmatpush.msra.mxu0 0.0
    %740 = vmatpush.msra.mxu0 0.0
    %741 = vmatpush.msra.mxu0 %v452
    %742 = vmatpush.msra.mxu0 %v451
    %743 = vmatpush.msra.mxu0 %v450
    %744 = vmatpush.msra.mxu0 %v449
    %745 = vmatmul.f32.gmra.mxu0 %v727
    %v746 = vpop.f32.mrf.mxu0
    %v747 = vadd.f32 0.0, %v746
    %748 = vdwg.mxu0
    %v749 = vadd.f32 %v447, %v747
    %v750 = vxor.u32 %v749, 2147483648
    %v751 = vmul.f32 %v750, 1.442695
    %v752 = vpow.pop %v751
    %v753 = vadd.f32 %v752, 1.0
    %v754 = vrcp.pop %v753
    %v755 = vmul.f32 %v753, %v754
    %v756 = vsub.f32 1.0, %v755
    %v757 = vmul.f32 %v754, %v756
    %v758 = vadd.f32 %v754, %v757
    %vm759 = vweird.f32 %v753
    %vm760 = vweird.f32 %v754
    %vm761 = vmor %vm759, %vm760
    %v762 = vsel %vm761, %v754, %v758
    %v763 = vand.u32 2147483647, %v753
    %vm764 = vcmp.eq.f32.partialorder %v763, 8.507059e+37
    %v765 = vand.u32 %v753, 2147483648
    %v766 = vor.u32 1.1754944e-38, %v765
    %v767 = vsel %vm764, %v766, %v762
    %v768 = vmul.f32 1.0, %v767
    %v769 = vtanh.pop %v749
    %v771 = vrot.slane %v716, 6
    %v773 = vmul.f32 %v768, %v771
    %775 = vrot.lane.b32.xlu0 %v769, 64
    %v776 = vpop.permute.xlu0 %775
    %v778 = vmul.f32 %v768, %v776
    %780 = vrot.lane.b32.xlu0 %v778, 32
    %v781 = vpop.permute.xlu0 %780
    %v783 = vadd.f32 %v773, %v781
    %v784 = vtanh.pop %v783
    %786 = vrot.lane.b32.xlu0 %v784, 64
    %v787 = vpop.permute.xlu0 %786
    %v789 = vmul.f32 %v768, %v787
    %791 = vrot.lane.b32.xlu0 %v789, 32
    %v792 = vpop.permute.xlu0 %791
    %v793 = vsel %vm431, %v792, 0
    %795 = vmatpush.msra.mxu0 0.0
    %796 = vmatpush.msra.mxu0 0.0
    %797 = vmatpush.msra.mxu0 0.0
    %798 = vmatpush.msra.mxu0 0.0
    %799 = vmatpush.msra.mxu0 0.0
    %800 = vmatpush.msra.mxu0 0.0
    %801 = vmatpush.msra.mxu0 0.0
    %802 = vmatpush.msra.mxu0 0.0
    %803 = vmatpush.msra.mxu0 0.0
    %804 = vmatpush.msra.mxu0 0.0
    %805 = vmatpush.msra.mxu0 0.0
    %806 = vmatpush.msra.mxu0 0.0
    %807 = vmatpush.msra.mxu0 %v452
    %808 = vmatpush.msra.mxu0 %v451
    %809 = vmatpush.msra.mxu0 %v450
    %810 = vmatpush.msra.mxu0 %v449
    %811 = vmatmul.f32.gmra.mxu0 %v793
    %v812 = vpop.f32.mrf.mxu0
    %v813 = vadd.f32 0.0, %v812
    %814 = vdwg.mxu0
    %v816 = vrot.slane %v813, 6
    %v818 = vadd.f32 %v447, %v816
    %v819 = vxor.u32 %v818, 2147483648
    %v820 = vmul.f32 %v819, 1.442695
    %v821 = vpow.pop %v820
    %v822 = vadd.f32 %v821, 1.0
    %v823 = vrcp.pop %v822
    %v824 = vmul.f32 %v822, %v823
    %v825 = vsub.f32 1.0, %v824
    %v826 = vmul.f32 %v823, %v825
    %v827 = vadd.f32 %v823, %v826
    %vm828 = vweird.f32 %v822
    %vm829 = vweird.f32 %v823
    %vm830 = vmor %vm828, %vm829
    %v831 = vsel %vm830, %v823, %v827
    %v832 = vand.u32 2147483647, %v822
    %vm833 = vcmp.eq.f32.partialorder %v832, 8.507059e+37
    %v834 = vand.u32 %v822, 2147483648
    %v835 = vor.u32 1.1754944e-38, %v834
    %v836 = vsel %vm833, %v835, %v831
    %v837 = vmul.f32 1.0, %v836
    %v838 = vtanh.pop %v818
    %v840 = vrot.slane %v783, 6
    %v842 = vmul.f32 %v837, %v840
    %844 = vrot.lane.b32.xlu0 %v838, 64
    %v845 = vpop.permute.xlu0 %844
    %v847 = vmul.f32 %v837, %v845
    %849 = vrot.lane.b32.xlu0 %v847, 32
    %v850 = vpop.permute.xlu0 %849
    %v852 = vadd.f32 %v842, %v850
    %v853 = vtanh.pop %v852
    %855 = vrot.lane.b32.xlu0 %v853, 64
    %v856 = vpop.permute.xlu0 %855
    %v858 = vmul.f32 %v837, %v856
    %v860 = vrot.slane %v858, 2
    %861 = vrot.lane.b32.xlu0 %v860, 32
    %v862 = vpop.permute.xlu0 %861
    %v863 = vsel %vm431, %v862, 0
    %865 = vmatpush.msra.mxu0 0.0
    %866 = vmatpush.msra.mxu0 0.0
    %867 = vmatpush.msra.mxu0 0.0
    %868 = vmatpush.msra.mxu0 0.0
    %869 = vmatpush.msra.mxu0 0.0
    %870 = vmatpush.msra.mxu0 0.0
    %871 = vmatpush.msra.mxu0 0.0
    %872 = vmatpush.msra.mxu0 0.0
    %873 = vmatpush.msra.mxu0 0.0
    %874 = vmatpush.msra.mxu0 0.0
    %875 = vmatpush.msra.mxu0 0.0
    %876 = vmatpush.msra.mxu0 0.0
    %877 = vmatpush.msra.mxu0 %v452
    %878 = vmatpush.msra.mxu0 %v451
    %879 = vmatpush.msra.mxu0 %v450
    %880 = vmatpush.msra.mxu0 %v449
    %881 = vmatmul.f32.gmra.mxu0 %v863
    %v882 = vpop.f32.mrf.mxu0
    %v883 = vadd.f32 0.0, %v882
    %884 = vdwg.mxu0
    %v886 = vrot.slane %v883, 4
    %v888 = vadd.f32 %v447, %v886
    %v889 = vxor.u32 %v888, 2147483648
    %v890 = vmul.f32 %v889, 1.442695
    %v891 = vpow.pop %v890
    %v892 = vadd.f32 %v891, 1.0
    %v893 = vrcp.pop %v892
    %v894 = vmul.f32 %v892, %v893
    %v895 = vsub.f32 1.0, %v894
    %v896 = vmul.f32 %v893, %v895
    %v897 = vadd.f32 %v893, %v896
    %vm898 = vweird.f32 %v892
    %vm899 = vweird.f32 %v893
    %vm900 = vmor %vm898, %vm899
    %v901 = vsel %vm900, %v893, %v897
    %v902 = vand.u32 2147483647, %v892
    %vm903 = vcmp.eq.f32.partialorder %v902, 8.507059e+37
    %v904 = vand.u32 %v892, 2147483648
    %v905 = vor.u32 1.1754944e-38, %v904
    %v906 = vsel %vm903, %v905, %v901
    %v907 = vmul.f32 1.0, %v906
    %v908 = vtanh.pop %v888
    %v910 = vrot.slane %v852, 6
    %v912 = vmul.f32 %v907, %v910
    %914 = vrot.lane.b32.xlu0 %v908, 64
    %v915 = vpop.permute.xlu0 %914
    %v917 = vmul.f32 %v907, %v915
    %919 = vrot.lane.b32.xlu0 %v917, 32
    %v920 = vpop.permute.xlu0 %919
    %v922 = vadd.f32 %v912, %v920
    %v923 = vtanh.pop %v922
    %925 = vrot.lane.b32.xlu0 %v923, 64
    %v926 = vpop.permute.xlu0 %925
    %v928 = vmul.f32 %v907, %v926
    %v930 = vrot.slane %v928, 4
    %931 = vrot.lane.b32.xlu0 %v930, 32
    %v932 = vpop.permute.xlu0 %931
    %v933 = vsel %vm431, %v932, 0
    %935 = vmatpush.msra.mxu0 0.0
    %936 = vmatpush.msra.mxu0 0.0
    %937 = vmatpush.msra.mxu0 0.0
    %938 = vmatpush.msra.mxu0 0.0
    %939 = vmatpush.msra.mxu0 0.0
    %940 = vmatpush.msra.mxu0 0.0
    %941 = vmatpush.msra.mxu0 0.0
    %942 = vmatpush.msra.mxu0 0.0
    %943 = vmatpush.msra.mxu0 0.0
    %944 = vmatpush.msra.mxu0 0.0
    %945 = vmatpush.msra.mxu0 0.0
    %946 = vmatpush.msra.mxu0 0.0
    %947 = vmatpush.msra.mxu0 %v452
    %948 = vmatpush.msra.mxu0 %v451
    %949 = vmatpush.msra.mxu0 %v450
    %950 = vmatpush.msra.mxu0 %v449
    %951 = vmatmul.f32.gmra.mxu0 %v933
    %v952 = vpop.f32.mrf.mxu0
    %v953 = vadd.f32 0.0, %v952
    %954 = vdwg.mxu0
    %v956 = vrot.slane %v953, 2
    %v958 = vadd.f32 %v447, %v956
    %v959 = vxor.u32 %v958, 2147483648
    %v960 = vmul.f32 %v959, 1.442695
    %v961 = vpow.pop %v960
    %v962 = vadd.f32 %v961, 1.0
    %v963 = vrcp.pop %v962
    %v964 = vmul.f32 %v962, %v963
    %v965 = vsub.f32 1.0, %v964
    %v966 = vmul.f32 %v963, %v965
    %v967 = vadd.f32 %v963, %v966
    %vm968 = vweird.f32 %v962
    %vm969 = vweird.f32 %v963
    %vm970 = vmor %vm968, %vm969
    %v971 = vsel %vm970, %v963, %v967
    %v972 = vand.u32 2147483647, %v962
    %vm973 = vcmp.eq.f32.partialorder %v972, 8.507059e+37
    %v974 = vand.u32 %v962, 2147483648
    %v975 = vor.u32 1.1754944e-38, %v974
    %v976 = vsel %vm973, %v975, %v971
    %v977 = vmul.f32 1.0, %v976
    %v978 = vtanh.pop %v958
    %v980 = vrot.slane %v922, 6
    %v982 = vmul.f32 %v977, %v980
    %984 = vrot.lane.b32.xlu0 %v978, 64
    %v985 = vpop.permute.xlu0 %984
    %v987 = vmul.f32 %v977, %v985
    %989 = vrot.lane.b32.xlu0 %v987, 32
    %v990 = vpop.permute.xlu0 %989
    %v992 = vadd.f32 %v982, %v990
    %v993 = vtanh.pop %v992
    %995 = vrot.lane.b32.xlu0 %v993, 64
    %v996 = vpop.permute.xlu0 %995
    %v998 = vmul.f32 %v977, %v996
    %vm999 = vcmask 1041408
    %v1000 = vsel %vm999, %v513, %v582
    %vm1001 = vcmask 1043456
    %v1002 = vsel %vm1001, %v1000, %v652
    %vm1003 = vcmask 1045504
    %v1004 = vsel %vm1003, %v1002, %v722
    %v1005 = vsel %vm999, %v789, %v858
    %v1006 = vsel %vm1001, %v1005, %v928
    %v1007 = vsel %vm1003, %v1006, %v998
    %v1008 = vpack.c.bf16 %v1007, %v1004
    %v1009 = vld [vmem:[%s13] sm:$0xf]
    %v1010 = vld [vmem:[%s13 + $0x4] sm:$0xf]
    %v1011 = vld [vmem:[%s13 + $0x8] sm:$0xf]
    %v1012 = vld [vmem:[%s13 + $0xc] sm:$0xf]
    %v1013 = vld [vmem:[%s15] sm:$0x1]
    %v1015 = vperm.slane %v1013, 0
    %1018 = vrot.lane.b32.xlu0 %v1008, 32
    %v1019 = vpop.permute.xlu0 %1018
    %v1024 = vunpack.c.l.b16 %v1009
    %v1025 = vunpack.c.l.b16 %v1010
    %v1026 = vunpack.c.l.b16 %v1011
    %v1027 = vunpack.c.l.b16 %v1012
    %v1028 = vpack.c.b16 %v1025, %v1024
    %v1029 = vpack.c.b16 %v1027, %v1026
    %v1033 = vsel %vm431, %v1019, 0
    %1035 = vmatpush.bf16.msra.mxu0 0
    %1036 = vmatpush.bf16.msra.mxu0 0
    %1037 = vmatpush.bf16.msra.mxu0 0
    %1038 = vmatpush.bf16.msra.mxu0 0
    %1039 = vmatpush.bf16.msra.mxu0 0
    %1040 = vmatpush.bf16.msra.mxu0 0
    %1041 = vmatpush.bf16.msra.mxu0 %v1029
    %1042 = vmatpush.bf16.msra.mxu0 %v1028
    %1043 = vmatmul.bf16.gmra.mxu0 %v1033
    %v1044 = vpop.f32.mrf.mxu0
    %v1045 = vadd.f32 %v1015, %v1044
    %v1046 = vpop.f32.mrf.mxu0
    %v1047 = vadd.f32 %v1015, %v1046
    %1048 = vdwg.mxu0
    %v1049 = vld [vmem:[%s14] sm:$0xff]
    %v1050 = vld [vmem:[%s14 + $0x8] sm:$0xff]
    %v1051 = vld [vmem:[%s14 + $0x10] sm:$0xff]
    %v1052 = vld [vmem:[%s14 + $0x18] sm:$0xff]
    %1053 = vmatpush.msra.mxu0 0.0
    %1054 = vmatpush.msra.mxu0 0.0
    %1055 = vmatpush.msra.mxu0 0.0
    %1056 = vmatpush.msra.mxu0 0.0
    %1057 = vmatpush.msra.mxu0 0.0
    %1058 = vmatpush.msra.mxu0 0.0
    %1059 = vmatpush.msra.mxu0 0.0
    %1060 = vmatpush.msra.mxu0 0.0
    %1061 = vmatpush.msra.mxu0 0.0
    %1062 = vmatpush.msra.mxu0 0.0
    %1063 = vmatpush.msra.mxu0 0.0
    %1064 = vmatpush.msra.mxu0 0.0
    %1065 = vmatpush.msra.mxu0 %v1052
    %1066 = vmatpush.msra.mxu0 %v1051
    %1067 = vmatpush.msra.mxu0 %v1050
    %1068 = vmatpush.msra.mxu0 %v1049
    %1069 = vmatmul.f32.gmra.mxu0 %v454
    %v1070 = vpop.f32.mrf.mxu0
    %v1071 = vadd.f32 0.0, %v1070
    %1072 = vdwg.mxu0
    %v1073 = vadd.f32 %v1045, %v1071
    %v1074 = vxor.u32 %v1073, 2147483648
    %v1075 = vmul.f32 %v1074, 1.442695
    %v1076 = vpow.pop %v1075
    %v1077 = vadd.f32 %v1076, 1.0
    %v1078 = vrcp.pop %v1077
    %v1079 = vmul.f32 %v1077, %v1078
    %v1080 = vsub.f32 1.0, %v1079
    %v1081 = vmul.f32 %v1078, %v1080
    %v1082 = vadd.f32 %v1078, %v1081
    %vm1083 = vweird.f32 %v1077
    %vm1084 = vweird.f32 %v1078
    %vm1085 = vmor %vm1083, %vm1084
    %v1086 = vsel %vm1085, %v1078, %v1082
    %v1087 = vand.u32 2147483647, %v1077
    %vm1088 = vcmp.eq.f32.partialorder %v1087, 8.507059e+37
    %v1089 = vand.u32 %v1077, 2147483648
    %v1090 = vor.u32 1.1754944e-38, %v1089
    %v1091 = vsel %vm1088, %v1090, %v1086
    %v1092 = vmul.f32 1.0, %v1091
    %v1093 = vtanh.pop %v1073
    %v1094 = vmul.f32 %v1092, 0.0
    %1096 = vrot.lane.b32.xlu0 %v1093, 64
    %v1097 = vpop.permute.xlu0 %1096
    %v1099 = vmul.f32 %v1092, %v1097
    %1101 = vrot.lane.b32.xlu0 %v1099, 32
    %v1102 = vpop.permute.xlu0 %1101
    %v1104 = vadd.f32 %v1094, %v1102
    %v1105 = vtanh.pop %v1104
    %1107 = vrot.lane.b32.xlu0 %v1105, 64
    %v1108 = vpop.permute.xlu0 %1107
    %v1110 = vmul.f32 %v1092, %v1108
    %vm1111 = vcmp.eq.s32.totalorder %v409, 1
    %v1112 = vsel %vm1111, 1, 0
    %1113 = vset.pattern.permute.xlu0 0
    %1114 = vperm.xlu0 %1113, %v1112
    %v1115 = vpop.permute.xlu0 %1114
    %vm1116 = vcmp.eq.s32.totalorder %v1115, 1
    %v1117 = vsel %vm1116, %v1110, 0.0
    %1119 = vrot.lane.b32.xlu0 %v1110, 32
    %v1120 = vpop.permute.xlu0 %1119
    %v1121 = vsel %vm431, %v1120, 0
    %1123 = vmatpush.msra.mxu0 0.0
    %1124 = vmatpush.msra.mxu0 0.0
    %1125 = vmatpush.msra.mxu0 0.0
    %1126 = vmatpush.msra.mxu0 0.0
    %1127 = vmatpush.msra.mxu0 0.0
    %1128 = vmatpush.msra.mxu0 0.0
    %1129 = vmatpush.msra.mxu0 0.0
    %1130 = vmatpush.msra.mxu0 0.0
    %1131 = vmatpush.msra.mxu0 0.0
    %1132 = vmatpush.msra.mxu0 0.0
    %1133 = vmatpush.msra.mxu0 0.0
    %1134 = vmatpush.msra.mxu0 0.0
    %1135 = vmatpush.msra.mxu0 %v1052
    %1136 = vmatpush.msra.mxu0 %v1051
    %1137 = vmatpush.msra.mxu0 %v1050
    %1138 = vmatpush.msra.mxu0 %v1049
    %1139 = vmatmul.f32.gmra.mxu0 %v1121
    %v1140 = vpop.f32.mrf.mxu0
    %v1141 = vadd.f32 0.0, %v1140
    %1142 = vdwg.mxu0
    %v1144 = vrot.slane %v1141, 6
    %v1146 = vadd.f32 %v1045, %v1144
    %v1147 = vxor.u32 %v1146, 2147483648
    %v1148 = vmul.f32 %v1147, 1.442695
    %v1149 = vpow.pop %v1148
    %v1150 = vadd.f32 %v1149, 1.0
    %v1151 = vrcp.pop %v1150
    %v1152 = vmul.f32 %v1150, %v1151
    %v1153 = vsub.f32 1.0, %v1152
    %v1154 = vmul.f32 %v1151, %v1153
    %v1155 = vadd.f32 %v1151, %v1154
    %vm1156 = vweird.f32 %v1150
    %vm1157 = vweird.f32 %v1151
    %vm1158 = vmor %vm1156, %vm1157
    %v1159 = vsel %vm1158, %v1151, %v1155
    %v1160 = vand.u32 2147483647, %v1150
    %vm1161 = vcmp.eq.f32.partialorder %v1160, 8.507059e+37
    %v1162 = vand.u32 %v1150, 2147483648
    %v1163 = vor.u32 1.1754944e-38, %v1162
    %v1164 = vsel %vm1161, %v1163, %v1159
    %v1165 = vmul.f32 1.0, %v1164
    %v1166 = vtanh.pop %v1146
    %v1168 = vrot.slane %v1104, 6
    %v1170 = vmul.f32 %v1165, %v1168
    %1172 = vrot.lane.b32.xlu0 %v1166, 64
    %v1173 = vpop.permute.xlu0 %1172
    %v1175 = vmul.f32 %v1165, %v1173
    %1177 = vrot.lane.b32.xlu0 %v1175, 32
    %v1178 = vpop.permute.xlu0 %1177
    %v1180 = vadd.f32 %v1170, %v1178
    %v1181 = vtanh.pop %v1180
    %1183 = vrot.lane.b32.xlu0 %v1181, 64
    %v1184 = vpop.permute.xlu0 %1183
    %v1186 = vmul.f32 %v1165, %v1184
    %vm1187 = vcmp.eq.s32.totalorder %v409, 2
    %v1188 = vsel %vm1187, 1, 0
    %1189 = vset.pattern.permute.xlu0 0
    %1190 = vperm.xlu0 %1189, %v1188
    %v1191 = vpop.permute.xlu0 %1190
    %vm1192 = vcmp.eq.s32.totalorder %v1191, 1
    %v1194 = vrot.slane %v1186, 2
    %1195 = vrot.lane.b32.xlu0 %v1194, 32
    %v1196 = vpop.permute.xlu0 %1195
    %1199 = vrot.lane.b32.xlu0 %v1117, 32
    %v1200 = vpop.permute.xlu0 %1199
    %v1202 = vsel %vm1192, %v1196, %v1200
    %v1203 = vsel %vm431, %v1196, 0
    %1205 = vmatpush.msra.mxu0 0.0
    %1206 = vmatpush.msra.mxu0 0.0
    %1207 = vmatpush.msra.mxu0 0.0
    %1208 = vmatpush.msra.mxu0 0.0
    %1209 = vmatpush.msra.mxu0 0.0
    %1210 = vmatpush.msra.mxu0 0.0
    %1211 = vmatpush.msra.mxu0 0.0
    %1212 = vmatpush.msra.mxu0 0.0
    %1213 = vmatpush.msra.mxu0 0.0
    %1214 = vmatpush.msra.mxu0 0.0
    %1215 = vmatpush.msra.mxu0 0.0
    %1216 = vmatpush.msra.mxu0 0.0
    %1217 = vmatpush.msra.mxu0 %v1052
    %1218 = vmatpush.msra.mxu0 %v1051
    %1219 = vmatpush.msra.mxu0 %v1050
    %1220 = vmatpush.msra.mxu0 %v1049
    %1221 = vmatmul.f32.gmra.mxu0 %v1203
    %v1222 = vpop.f32.mrf.mxu0
    %v1223 = vadd.f32 0.0, %v1222
    %1224 = vdwg.mxu0
    %v1226 = vrot.slane %v1223, 4
    %v1228 = vadd.f32 %v1045, %v1226
    %v1229 = vxor.u32 %v1228, 2147483648
    %v1230 = vmul.f32 %v1229, 1.442695
    %v1231 = vpow.pop %v1230
    %v1232 = vadd.f32 %v1231, 1.0
    %v1233 = vrcp.pop %v1232
    %v1234 = vmul.f32 %v1232, %v1233
    %v1235 = vsub.f32 1.0, %v1234
    %v1236 = vmul.f32 %v1233, %v1235
    %v1237 = vadd.f32 %v1233, %v1236
    %vm1238 = vweird.f32 %v1232
    %vm1239 = vweird.f32 %v1233
    %vm1240 = vmor %vm1238, %vm1239
    %v1241 = vsel %vm1240, %v1233, %v1237
    %v1242 = vand.u32 2147483647, %v1232
    %vm1243 = vcmp.eq.f32.partialorder %v1242, 8.507059e+37
    %v1244 = vand.u32 %v1232, 2147483648
    %v1245 = vor.u32 1.1754944e-38, %v1244
    %v1246 = vsel %vm1243, %v1245, %v1241
    %v1247 = vmul.f32 1.0, %v1246
    %v1248 = vtanh.pop %v1228
    %v1250 = vrot.slane %v1180, 6
    %v1252 = vmul.f32 %v1247, %v1250
    %1254 = vrot.lane.b32.xlu0 %v1248, 64
    %v1255 = vpop.permute.xlu0 %1254
    %v1257 = vmul.f32 %v1247, %v1255
    %1259 = vrot.lane.b32.xlu0 %v1257, 32
    %v1260 = vpop.permute.xlu0 %1259
    %v1262 = vadd.f32 %v1252, %v1260
    %v1263 = vtanh.pop %v1262
    %1265 = vrot.lane.b32.xlu0 %v1263, 64
    %v1266 = vpop.permute.xlu0 %1265
    %v1268 = vmul.f32 %v1247, %v1266
    %vm1269 = vcmp.eq.s32.totalorder %v409, 3
    %v1270 = vsel %vm1269, 1, 0
    %1271 = vset.pattern.permute.xlu0 0
    %1272 = vperm.xlu0 %1271, %v1270
    %v1273 = vpop.permute.xlu0 %1272
    %vm1274 = vcmp.eq.s32.totalorder %v1273, 1
    %v1276 = vrot.slane %v1268, 4
    %1277 = vrot.lane.b32.xlu0 %v1276, 32
    %v1278 = vpop.permute.xlu0 %1277
    %v1280 = vsel %vm1274, %v1278, %v1202
    %v1281 = vsel %vm431, %v1278, 0
    %1283 = vmatpush.msra.mxu0 0.0
    %1284 = vmatpush.msra.mxu0 0.0
    %1285 = vmatpush.msra.mxu0 0.0
    %1286 = vmatpush.msra.mxu0 0.0
    %1287 = vmatpush.msra.mxu0 0.0
    %1288 = vmatpush.msra.mxu0 0.0
    %1289 = vmatpush.msra.mxu0 0.0
    %1290 = vmatpush.msra.mxu0 0.0
    %1291 = vmatpush.msra.mxu0 0.0
    %1292 = vmatpush.msra.mxu0 0.0
    %1293 = vmatpush.msra.mxu0 0.0
    %1294 = vmatpush.msra.mxu0 0.0
    %1295 = vmatpush.msra.mxu0 %v1052
    %1296 = vmatpush.msra.mxu0 %v1051
    %1297 = vmatpush.msra.mxu0 %v1050
    %1298 = vmatpush.msra.mxu0 %v1049
    %1299 = vmatmul.f32.gmra.mxu0 %v1281
    %v1300 = vpop.f32.mrf.mxu0
    %v1301 = vadd.f32 0.0, %v1300
    %1302 = vdwg.mxu0
    %v1304 = vrot.slane %v1301, 2
    %v1306 = vadd.f32 %v1045, %v1304
    %v1307 = vxor.u32 %v1306, 2147483648
    %v1308 = vmul.f32 %v1307, 1.442695
    %v1309 = vpow.pop %v1308
    %v1310 = vadd.f32 %v1309, 1.0
    %v1311 = vrcp.pop %v1310
    %v1312 = vmul.f32 %v1310, %v1311
    %v1313 = vsub.f32 1.0, %v1312
    %v1314 = vmul.f32 %v1311, %v1313
    %v1315 = vadd.f32 %v1311, %v1314
    %vm1316 = vweird.f32 %v1310
    %vm1317 = vweird.f32 %v1311
    %vm1318 = vmor %vm1316, %vm1317
    %v1319 = vsel %vm1318, %v1311, %v1315
    %v1320 = vand.u32 2147483647, %v1310
    %vm1321 = vcmp.eq.f32.partialorder %v1320, 8.507059e+37
    %v1322 = vand.u32 %v1310, 2147483648
    %v1323 = vor.u32 1.1754944e-38, %v1322
    %v1324 = vsel %vm1321, %v1323, %v1319
    %v1325 = vmul.f32 1.0, %v1324
    %v1326 = vtanh.pop %v1306
    %v1328 = vrot.slane %v1262, 6
    %v1330 = vmul.f32 %v1325, %v1328
    %1332 = vrot.lane.b32.xlu0 %v1326, 64
    %v1333 = vpop.permute.xlu0 %1332
    %v1335 = vmul.f32 %v1325, %v1333
    %1337 = vrot.lane.b32.xlu0 %v1335, 32
    %v1338 = vpop.permute.xlu0 %1337
    %v1340 = vadd.f32 %v1330, %v1338
    %v1341 = vtanh.pop %v1340
    %1343 = vrot.lane.b32.xlu0 %v1341, 64
    %v1344 = vpop.permute.xlu0 %1343
    %v1346 = vmul.f32 %v1325, %v1344
    %vm1347 = vcmp.eq.s32.totalorder %v409, 4
    %v1348 = vsel %vm1347, 1, 0
    %1349 = vset.pattern.permute.xlu0 0
    %1350 = vperm.xlu0 %1349, %v1348
    %v1351 = vpop.permute.xlu0 %1350
    %vm1352 = vcmp.eq.s32.totalorder %v1351, 1
    %v1354 = vrot.slane %v1346, 6
    %1355 = vrot.lane.b32.xlu0 %v1354, 32
    %v1356 = vpop.permute.xlu0 %1355
    %v1358 = vsel %vm1352, %v1356, %v1280
    %v1359 = vsel %vm431, %v1356, 0
    %1361 = vmatpush.msra.mxu0 0.0
    %1362 = vmatpush.msra.mxu0 0.0
    %1363 = vmatpush.msra.mxu0 0.0
    %1364 = vmatpush.msra.mxu0 0.0
    %1365 = vmatpush.msra.mxu0 0.0
    %1366 = vmatpush.msra.mxu0 0.0
    %1367 = vmatpush.msra.mxu0 0.0
    %1368 = vmatpush.msra.mxu0 0.0
    %1369 = vmatpush.msra.mxu0 0.0
    %1370 = vmatpush.msra.mxu0 0.0
    %1371 = vmatpush.msra.mxu0 0.0
    %1372 = vmatpush.msra.mxu0 0.0
    %1373 = vmatpush.msra.mxu0 %v1052
    %1374 = vmatpush.msra.mxu0 %v1051
    %1375 = vmatpush.msra.mxu0 %v1050
    %1376 = vmatpush.msra.mxu0 %v1049
    %1377 = vmatmul.f32.gmra.mxu0 %v1359
    %v1378 = vpop.f32.mrf.mxu0
    %v1379 = vadd.f32 0.0, %v1378
    %1380 = vdwg.mxu0
    %v1381 = vadd.f32 %v1047, %v1379
    %v1382 = vxor.u32 %v1381, 2147483648
    %v1383 = vmul.f32 %v1382, 1.442695
    %v1384 = vpow.pop %v1383
    %v1385 = vadd.f32 %v1384, 1.0
    %v1386 = vrcp.pop %v1385
    %v1387 = vmul.f32 %v1385, %v1386
    %v1388 = vsub.f32 1.0, %v1387
    %v1389 = vmul.f32 %v1386, %v1388
    %v1390 = vadd.f32 %v1386, %v1389
    %vm1391 = vweird.f32 %v1385
    %vm1392 = vweird.f32 %v1386
    %vm1393 = vmor %vm1391, %vm1392
    %v1394 = vsel %vm1393, %v1386, %v1390
    %v1395 = vand.u32 2147483647, %v1385
    %vm1396 = vcmp.eq.f32.partialorder %v1395, 8.507059e+37
    %v1397 = vand.u32 %v1385, 2147483648
    %v1398 = vor.u32 1.1754944e-38, %v1397
    %v1399 = vsel %vm1396, %v1398, %v1394
    %v1400 = vmul.f32 1.0, %v1399
    %v1401 = vtanh.pop %v1381
    %v1403 = vrot.slane %v1340, 6
    %v1405 = vmul.f32 %v1400, %v1403
    %1407 = vrot.lane.b32.xlu0 %v1401, 64
    %v1408 = vpop.permute.xlu0 %1407
    %v1410 = vmul.f32 %v1400, %v1408
    %1412 = vrot.lane.b32.xlu0 %v1410, 32
    %v1413 = vpop.permute.xlu0 %1412
    %v1415 = vadd.f32 %v1405, %v1413
    %v1416 = vtanh.pop %v1415
    %1418 = vrot.lane.b32.xlu0 %v1416, 64
    %v1419 = vpop.permute.xlu0 %1418
    %v1421 = vmul.f32 %v1400, %v1419
    %vm1422 = vcmp.eq.s32.totalorder %v409, 5
    %v1423 = vsel %vm1422, 1, 0
    %1424 = vset.pattern.permute.xlu0 0
    %1425 = vperm.xlu0 %1424, %v1423
    %v1426 = vpop.permute.xlu0 %1425
    %vm1427 = vcmp.eq.s32.totalorder %v1426, 1
    %1429 = vrot.lane.b32.xlu0 %v1358, 96
    %v1430 = vpop.permute.xlu0 %1429
    %v1432 = vsel %vm1427, %v1421, %v1430
    %1434 = vrot.lane.b32.xlu0 %v1421, 32
    %v1435 = vpop.permute.xlu0 %1434
    %v1436 = vsel %vm431, %v1435, 0
    %1438 = vmatpush.msra.mxu0 0.0
    %1439 = vmatpush.msra.mxu0 0.0
    %1440 = vmatpush.msra.mxu0 0.0
    %1441 = vmatpush.msra.mxu0 0.0
    %1442 = vmatpush.msra.mxu0 0.0
    %1443 = vmatpush.msra.mxu0 0.0
    %1444 = vmatpush.msra.mxu0 0.0
    %1445 = vmatpush.msra.mxu0 0.0
    %1446 = vmatpush.msra.mxu0 0.0
    %1447 = vmatpush.msra.mxu0 0.0
    %1448 = vmatpush.msra.mxu0 0.0
    %1449 = vmatpush.msra.mxu0 0.0
    %1450 = vmatpush.msra.mxu0 %v1052
    %1451 = vmatpush.msra.mxu0 %v1051
    %1452 = vmatpush.msra.mxu0 %v1050
    %1453 = vmatpush.msra.mxu0 %v1049
    %1454 = vmatmul.f32.gmra.mxu0 %v1436
    %v1455 = vpop.f32.mrf.mxu0
    %v1456 = vadd.f32 0.0, %v1455
    %1457 = vdwg.mxu0
    %v1459 = vrot.slane %v1456, 6
    %v1461 = vadd.f32 %v1047, %v1459
    %v1462 = vxor.u32 %v1461, 2147483648
    %v1463 = vmul.f32 %v1462, 1.442695
    %v1464 = vpow.pop %v1463
    %v1465 = vadd.f32 %v1464, 1.0
    %v1466 = vrcp.pop %v1465
    %v1467 = vmul.f32 %v1465, %v1466
    %v1468 = vsub.f32 1.0, %v1467
    %v1469 = vmul.f32 %v1466, %v1468
    %v1470 = vadd.f32 %v1466, %v1469
    %vm1471 = vweird.f32 %v1465
    %vm1472 = vweird.f32 %v1466
    %vm1473 = vmor %vm1471, %vm1472
    %v1474 = vsel %vm1473, %v1466, %v1470
    %v1475 = vand.u32 2147483647, %v1465
    %vm1476 = vcmp.eq.f32.partialorder %v1475, 8.507059e+37
    %v1477 = vand.u32 %v1465, 2147483648
    %v1478 = vor.u32 1.1754944e-38, %v1477
    %v1479 = vsel %vm1476, %v1478, %v1474
    %v1480 = vmul.f32 1.0, %v1479
    %v1481 = vtanh.pop %v1461
    %v1483 = vrot.slane %v1415, 6
    %v1485 = vmul.f32 %v1480, %v1483
    %1487 = vrot.lane.b32.xlu0 %v1481, 64
    %v1488 = vpop.permute.xlu0 %1487
    %v1490 = vmul.f32 %v1480, %v1488
    %1492 = vrot.lane.b32.xlu0 %v1490, 32
    %v1493 = vpop.permute.xlu0 %1492
    %v1495 = vadd.f32 %v1485, %v1493
    %v1496 = vtanh.pop %v1495
    %1498 = vrot.lane.b32.xlu0 %v1496, 64
    %v1499 = vpop.permute.xlu0 %1498
    %v1501 = vmul.f32 %v1480, %v1499
    %vm1502 = vcmp.eq.s32.totalorder %v409, 6
    %v1503 = vsel %vm1502, 1, 0
    %1504 = vset.pattern.permute.xlu0 0
    %1505 = vperm.xlu0 %1504, %v1503
    %v1506 = vpop.permute.xlu0 %1505
    %vm1507 = vcmp.eq.s32.totalorder %v1506, 1
    %v1509 = vrot.slane %v1501, 2
    %1510 = vrot.lane.b32.xlu0 %v1509, 32
    %v1511 = vpop.permute.xlu0 %1510
    %1514 = vrot.lane.b32.xlu0 %v1432, 32
    %v1515 = vpop.permute.xlu0 %1514
    %v1517 = vsel %vm1507, %v1511, %v1515
    %v1518 = vsel %vm431, %v1511, 0
    %1520 = vmatpush.msra.mxu0 0.0
    %1521 = vmatpush.msra.mxu0 0.0
    %1522 = vmatpush.msra.mxu0 0.0
    %1523 = vmatpush.msra.mxu0 0.0
    %1524 = vmatpush.msra.mxu0 0.0
    %1525 = vmatpush.msra.mxu0 0.0
    %1526 = vmatpush.msra.mxu0 0.0
    %1527 = vmatpush.msra.mxu0 0.0
    %1528 = vmatpush.msra.mxu0 0.0
    %1529 = vmatpush.msra.mxu0 0.0
    %1530 = vmatpush.msra.mxu0 0.0
    %1531 = vmatpush.msra.mxu0 0.0
    %1532 = vmatpush.msra.mxu0 %v1052
    %1533 = vmatpush.msra.mxu0 %v1051
    %1534 = vmatpush.msra.mxu0 %v1050
    %1535 = vmatpush.msra.mxu0 %v1049
    %1536 = vmatmul.f32.gmra.mxu0 %v1518
    %v1537 = vpop.f32.mrf.mxu0
    %v1538 = vadd.f32 0.0, %v1537
    %1539 = vdwg.mxu0
    %v1541 = vrot.slane %v1538, 4
    %v1543 = vadd.f32 %v1047, %v1541
    %v1544 = vxor.u32 %v1543, 2147483648
    %v1545 = vmul.f32 %v1544, 1.442695
    %v1546 = vpow.pop %v1545
    %v1547 = vadd.f32 %v1546, 1.0
    %v1548 = vrcp.pop %v1547
    %v1549 = vmul.f32 %v1547, %v1548
    %v1550 = vsub.f32 1.0, %v1549
    %v1551 = vmul.f32 %v1548, %v1550
    %v1552 = vadd.f32 %v1548, %v1551
    %vm1553 = vweird.f32 %v1547
    %vm1554 = vweird.f32 %v1548
    %vm1555 = vmor %vm1553, %vm1554
    %v1556 = vsel %vm1555, %v1548, %v1552
    %v1557 = vand.u32 2147483647, %v1547
    %vm1558 = vcmp.eq.f32.partialorder %v1557, 8.507059e+37
    %v1559 = vand.u32 %v1547, 2147483648
    %v1560 = vor.u32 1.1754944e-38, %v1559
    %v1561 = vsel %vm1558, %v1560, %v1556
    %v1562 = vmul.f32 1.0, %v1561
    %v1563 = vtanh.pop %v1543
    %v1565 = vrot.slane %v1495, 6
    %v1567 = vmul.f32 %v1562, %v1565
    %1569 = vrot.lane.b32.xlu0 %v1563, 64
    %v1570 = vpop.permute.xlu0 %1569
    %v1572 = vmul.f32 %v1562, %v1570
    %1574 = vrot.lane.b32.xlu0 %v1572, 32
    %v1575 = vpop.permute.xlu0 %1574
    %v1577 = vadd.f32 %v1567, %v1575
    %v1578 = vtanh.pop %v1577
    %1580 = vrot.lane.b32.xlu0 %v1578, 64
    %v1581 = vpop.permute.xlu0 %1580
    %v1583 = vmul.f32 %v1562, %v1581
    %vm1584 = vcmp.eq.s32.totalorder %v409, 7
    %v1585 = vsel %vm1584, 1, 0
    %1586 = vset.pattern.permute.xlu0 0
    %1587 = vperm.xlu0 %1586, %v1585
    %v1588 = vpop.permute.xlu0 %1587
    %vm1589 = vcmp.eq.s32.totalorder %v1588, 1
    %v1591 = vrot.slane %v1583, 4
    %1592 = vrot.lane.b32.xlu0 %v1591, 32
    %v1593 = vpop.permute.xlu0 %1592
    %v1595 = vsel %vm1589, %v1593, %v1517
    %v1596 = vsel %vm431, %v1593, 0
    %1598 = vmatpush.msra.mxu0 0.0
    %1599 = vmatpush.msra.mxu0 0.0
    %1600 = vmatpush.msra.mxu0 0.0
    %1601 = vmatpush.msra.mxu0 0.0
    %1602 = vmatpush.msra.mxu0 0.0
    %1603 = vmatpush.msra.mxu0 0.0
    %1604 = vmatpush.msra.mxu0 0.0
    %1605 = vmatpush.msra.mxu0 0.0
    %1606 = vmatpush.msra.mxu0 0.0
    %1607 = vmatpush.msra.mxu0 0.0
    %1608 = vmatpush.msra.mxu0 0.0
    %1609 = vmatpush.msra.mxu0 0.0
    %1610 = vmatpush.msra.mxu0 %v1052
    %1611 = vmatpush.msra.mxu0 %v1051
    %1612 = vmatpush.msra.mxu0 %v1050
    %1613 = vmatpush.msra.mxu0 %v1049
    %1614 = vmatmul.f32.gmra.mxu0 %v1596
    %v1615 = vpop.f32.mrf.mxu0
    %v1616 = vadd.f32 0.0, %v1615
    %1617 = vdwg.mxu0
    %v1619 = vrot.slane %v1616, 2
    %v1621 = vadd.f32 %v1047, %v1619
    %v1622 = vxor.u32 %v1621, 2147483648
    %v1623 = vmul.f32 %v1622, 1.442695
    %v1624 = vpow.pop %v1623
    %v1625 = vadd.f32 %v1624, 1.0
    %v1626 = vrcp.pop %v1625
    %v1627 = vmul.f32 %v1625, %v1626
    %v1628 = vsub.f32 1.0, %v1627
    %v1629 = vmul.f32 %v1626, %v1628
    %v1630 = vadd.f32 %v1626, %v1629
    %vm1631 = vweird.f32 %v1625
    %vm1632 = vweird.f32 %v1626
    %vm1633 = vmor %vm1631, %vm1632
    %v1634 = vsel %vm1633, %v1626, %v1630
    %v1635 = vand.u32 2147483647, %v1625
    %vm1636 = vcmp.eq.f32.partialorder %v1635, 8.507059e+37
    %v1637 = vand.u32 %v1625, 2147483648
    %v1638 = vor.u32 1.1754944e-38, %v1637
    %v1639 = vsel %vm1636, %v1638, %v1634
    %v1640 = vmul.f32 1.0, %v1639
    %v1641 = vtanh.pop %v1621
    %v1643 = vrot.slane %v1577, 6
    %v1645 = vmul.f32 %v1640, %v1643
    %1647 = vrot.lane.b32.xlu0 %v1641, 64
    %v1648 = vpop.permute.xlu0 %1647
    %v1650 = vmul.f32 %v1640, %v1648
    %1652 = vrot.lane.b32.xlu0 %v1650, 32
    %v1653 = vpop.permute.xlu0 %1652
    %v1655 = vadd.f32 %v1645, %v1653
    %v1656 = vtanh.pop %v1655
    %1658 = vrot.lane.b32.xlu0 %v1656, 64
    %v1659 = vpop.permute.xlu0 %1658
    %v1661 = vmul.f32 %v1640, %v1659
    %vm1662 = vcmp.eq.s32.totalorder %v409, 8
    %v1663 = vsel %vm1662, 1, 0
    %1664 = vset.pattern.permute.xlu0 0
    %1665 = vperm.xlu0 %1664, %v1663
    %v1666 = vpop.permute.xlu0 %1665
    %vm1667 = vcmp.eq.s32.totalorder %v1666, 1
    %v1669 = vrot.slane %v1661, 6
    %1670 = vrot.lane.b32.xlu0 %v1669, 32
    %v1671 = vpop.permute.xlu0 %1670
    %v1673 = vsel %vm1667, %v1671, %v1595
    %v1674 = vld [vmem:[%s16] sm:$0xff]
    %v1675 = vld [vmem:[%s16 + $0x8] sm:$0xff]
    %v1676 = vld [vmem:[%s16 + $0x10] sm:$0xff]
    %v1677 = vld [vmem:[%s16 + $0x18] sm:$0xff]
    %v1678 = vld [vmem:[%s17] sm:$0x1]
    %v1680 = vperm.slane %v1678, 0
    %v1683 = vsel %vm431, %v1673, 0
    %1685 = vmatpush.msra.mxu0 0.0
    %1686 = vmatpush.msra.mxu0 0.0
    %1687 = vmatpush.msra.mxu0 0.0
    %1688 = vmatpush.msra.mxu0 0.0
    %1689 = vmatpush.msra.mxu0 0.0
    %1690 = vmatpush.msra.mxu0 0.0
    %1691 = vmatpush.msra.mxu0 0.0
    %1692 = vmatpush.msra.mxu0 0.0
    %1693 = vmatpush.msra.mxu0 0.0
    %1694 = vmatpush.msra.mxu0 0.0
    %1695 = vmatpush.msra.mxu0 0.0
    %1696 = vmatpush.msra.mxu0 0.0
    %1697 = vmatpush.msra.mxu0 %v1677
    %1698 = vmatpush.msra.mxu0 %v1676
    %1699 = vmatpush.msra.mxu0 %v1675
    %1700 = vmatpush.msra.mxu0 %v1674
    %1701 = vmatmul.f32.gmra.mxu0 %v1683
    %v1702 = vpop.f32.mrf.mxu0
    %v1703 = vadd.f32 %v1680, %v1702
    %1704 = vdwg.mxu0
    %v1705 = vxor.u32 %v1703, 2147483648
    %v1706 = vmul.f32 %v1705, 1.442695
    %v1707 = vpow.pop %v1706
    %v1708 = vadd.f32 %v1707, 1.0
    %v1709 = vrcp.pop %v1708
    %v1710 = vmul.f32 %v1708, %v1709
    %v1711 = vsub.f32 1.0, %v1710
    %v1712 = vmul.f32 %v1709, %v1711
    %v1713 = vadd.f32 %v1709, %v1712
    %vm1714 = vweird.f32 %v1708
    %vm1715 = vweird.f32 %v1709
    %vm1716 = vmor %vm1714, %vm1715
    %v1717 = vsel %vm1716, %v1709, %v1713
    %v1718 = vand.u32 2147483647, %v1708
    %vm1719 = vcmp.eq.f32.partialorder %v1718, 8.507059e+37
    %v1720 = vand.u32 %v1708, 2147483648
    %v1721 = vor.u32 1.1754944e-38, %v1720
    %v1722 = vsel %vm1719, %v1721, %v1717
    %v1723 = vmul.f32 1.0, %v1722
    %v1724 = vmul.f32 %v1723, %v267
    %v1725 = vpack.c.bf16 %v1723, %v1723
    %1726 = vmatpush.bf16.msra.mxu0 %v246
    %1727 = vmatpush.bf16.msra.mxu0 %v245
    %1728 = vmatpush.bf16.msra.mxu0 %v244
    %1729 = vmatpush.bf16.msra.mxu0 %v243
    %1730 = vmatpush.bf16.msra.mxu0 %v242
    %1731 = vmatpush.bf16.msra.mxu0 %v241
    %1732 = vmatpush.bf16.msra.mxu0 %v240
    %1733 = vmatpush.bf16.msra.mxu0 %v239
    %1734 = vmatmul.bf16.gmra.mxu0 %v1725
    %v1735 = vpop.f32.mrf.mxu0
    %v1736 = vadd.f32 0.0, %v1735
    %v1737 = vpop.f32.mrf.mxu0
    %1738 = vdwg.mxu0
    %v1739 = vmax.f32 %v1736, 0.0
    %v1740 = vadd.f32 %v1724, %v1739
    %v1741 = vmul.f32 %v1723, 0.5
    %v1742 = vmul.f32 %v1740, 0.5
    %v1743 = vadd.f32 %v1741, %v1742
    %1744 = vst [vmem:[#allocation3] sm:$0x3] %v1743
    // Predicated region
    $region74: #{gtn_rec_forward.1} parent=1 // pred_check
      _
    $region75: #{gtn_rec_forward.1} parent=1 // pred_check_branch
      %1746 = sbr.rel (0) target = $region77
    $region76: #{gtn_rec_forward.1} parent=1 // pred_region
      %1748 = vsyncadd [#allocation4], 0
      %s1750 = sshll.u32 [#allocation3], 4
      %s1751 = int_to_ptr.vmem [resolvable:$true] %s1750
      %s1752 = sshll.u32 %s18, 4
      %s1753 = int_to_ptr.hbm [resolvable:$true] %s1752
      %1755 = dma.vmem_to_hbm [thread:$0]  %s1751, 32, %s1753, [#allocation4]
    $region77: #{gtn_rec_forward.1} parent=1 // pred_fallthru
      _
    // Predicated region
    $region78: #{gtn_rec_forward.1} parent=1 // pred_check
      _
    $region79: #{gtn_rec_forward.1} parent=1 // pred_check_branch
      %1757 = sbr.rel (0) target = $region81
    $region80: #{gtn_rec_forward.1} parent=1 // pred_region
      %1759 = dma.done [#allocation4], 32
    $region81: #{gtn_rec_forward.1} parent=1 // pred_fallthru
      _
    %1760 = vsyncpa [#allocation4], 1

</llo_original>
